<compile_context>
chip_gen: v7x
topology: tpu7x:2x2x1
jax: 0.10.0
libtpu: 0.0.40
codegen_flags: <defaults>
</compile_context>

<pallas_src>
import functools

import jax
import jax.numpy as jnp
from jax.experimental import pallas as pl
from jax.experimental.pallas import tpu as pltpu

BN_EPS = 1e-5
LANE = 128


def _vmem_capacity_bytes():
    try:
        info = pltpu.get_tpu_info()
        for attr in ("vmem_capacity_bytes", "vmem_bytes", "vmem_size_bytes"):
            v = getattr(info, attr, None)
            if v:
                return int(v)
    except Exception:
        pass
    return 64 * 1024 * 1024


_VMEM_CAP = _vmem_capacity_bytes()
# v5e/v6e (128 MiB VMEM): ~100 MiB scoped limit, big row tiles.
# v7x (64 MiB per TC):    ~40 MiB scoped limit, 512-row tiles.
VMEM_LIMIT_BYTES = int(max(min(_VMEM_CAP - 24 * 1024 * 1024,
                               100 * 1024 * 1024), 32 * 1024 * 1024))
TARGET_TILE_ROWS = 512 if _VMEM_CAP <= 72 * 1024 * 1024 else 1536

# bf16 MXU inputs + bf16 dense intermediates by default (accumulation and all
# BN statistics stay f32).  Pass compute_dtype=jnp.float32 to res_block_forward
# for exact fp32 parity with the PyTorch reference.
DEFAULT_COMPUTE_DTYPE = jnp.bfloat16


def _compiler_params():
    return pltpu.CompilerParams(dimension_semantics=("parallel",),
                                vmem_limit_bytes=VMEM_LIMIT_BYTES)


# ----------------------------- Pallas kernels ------------------------------ #

def _conv1_kernel(groups, th, wout, cin_p, sc_tap, has_proj, *refs):
    """Grouped 3x3 conv (+ fused 1x1 projection shortcut) + BN partial stats.

    The input slab is the phase-decomposed (space-to-depth by stride) padded
    input for one row tile.  Each `group` is a set of taps sharing a spatial
    offset whose phases are contiguous in the channel axis, so it becomes one
    MXU matmul with K = ntaps * cin_p (stride=2: 9 taps -> 5 matmuls).
    """
    if has_proj:
        (x_ref, w_ref, wsc_ref,
         y_ref, s_ref, q_ref, ysc_ref, ssc_ref, qsc_ref, acc_ref) = refs
    else:
        x_ref, w_ref, y_ref, s_ref, q_ref, acc_ref = refs
    tm = th * wout

    row = 0
    for gi, (oy, ox, p0, ntaps) in enumerate(groups):
        k = ntaps * cin_p
        lhs = x_ref[oy:oy + th, ox:ox + wout,
                    p0 * cin_p:p0 * cin_p + k].reshape(tm, k)
        part = jnp.dot(lhs, w_ref[row:row + k, :],
                       preferred_element_type=jnp.float32)
        if gi == 0:
            acc_ref[...] = part
        else:
            acc_ref[...] += part
        row += k

    acc = acc_ref[...]
    y_ref[...] = acc.astype(y_ref.dtype)
    s_ref[...] = jnp.sum(acc, axis=0, keepdims=True)
    q_ref[...] = jnp.sum(acc * acc, axis=0, keepdims=True)

    if has_proj:
        # The 1x1/stride shortcut conv reads one phase window of the same slab
        # -> free input reuse, zero extra HBM traffic.
        oy, ox, ph = sc_tap
        lhs = x_ref[oy:oy + th, ox:ox + wout,
                    ph * cin_p:(ph + 1) * cin_p].reshape(tm, cin_p)
        acc_sc = jnp.dot(lhs, wsc_ref[...], preferred_element_type=jnp.float32)
        ysc_ref[...] = acc_sc.astype(ysc_ref.dtype)
        ssc_ref[...] = jnp.sum(acc_sc, axis=0, keepdims=True)
        qsc_ref[...] = jnp.sum(acc_sc * acc_sc, axis=0, keepdims=True)


def _conv2_bn_kernel(groups, th, wout, cin_p, n_ht,
                     x_ref, w_ref, sc1_ref, sh1_ref,
                     y_ref, s_ref, q_ref, a_ref, acc_ref):
    """Fused BN1(batch stats)+ReLU prologue, then grouped 3x3/1 conv + stats."""
    rows, pw, _ = x_ref.shape
    tm = th * wout

    # BN1 apply + ReLU on the pre-BN conv1-output slab.  The slab's spatial
    # zero-padding must stay zero (BN would map 0 -> relu(shift) != 0):
    # columns 0 / pw-1 always; row 0 only on the first tile of an image;
    # row rows-1 only on the last tile of an image.
    tile = pl.program_id(0) % n_ht
    r_idx = jax.lax.broadcasted_iota(jnp.int32, (rows, pw, 1), 0)
    c_idx = jax.lax.broadcasted_iota(jnp.int32, (rows, pw, 1), 1)
    is_pad = (c_idx == 0) | (c_idx == pw - 1)
    is_pad = is_pad | ((r_idx == 0) & (tile == 0))
    is_pad = is_pad | ((r_idx == rows - 1) & (tile == n_ht - 1))

    a = x_ref[...].astype(jnp.float32) * sc1_ref[...].reshape(1, 1, -1)
    a = jnp.maximum(a + sh1_ref[...].reshape(1, 1, -1), 0.0)
    a_ref[...] = jnp.where(is_pad, 0.0, a).astype(a_ref.dtype)

    row = 0
    for gi, (oy, ox, p0, ntaps) in enumerate(groups):
        k = ntaps * cin_p
        lhs = a_ref[oy:oy + th, ox:ox + wout,
                    p0 * cin_p:p0 * cin_p + k].reshape(tm, k)
        part = jnp.dot(lhs, w_ref[row:row + k, :],
                       preferred_element_type=jnp.float32)
        if gi == 0:
            acc_ref[...] = part
        else:
            acc_ref[...] += part
        row += k

    acc = acc_ref[...]
    y_ref[...] = acc.astype(y_ref.dtype)
    s_ref[...] = jnp.sum(acc, axis=0, keepdims=True)
    q_ref[...] = jnp.sum(acc * acc, axis=0, keepdims=True)


def _affine_add_relu_kernel(y_ref, sc_ref, a_ref, b_ref, o_ref):
    y = y_ref[...].astype(jnp.float32) * a_ref[...] + b_ref[...]
    o_ref[...] = jnp.maximum(y + sc_ref[...].astype(jnp.float32), 0.0
                             ).astype(o_ref.dtype)


def _affine_proj_add_relu_kernel(y_ref, ysc_ref, a_ref, b_ref, asc_ref,
                                 bsc_ref, o_ref):
    y = y_ref[...].astype(jnp.float32) * a_ref[...] + b_ref[...]
    s = ysc_ref[...].astype(jnp.float32) * asc_ref[...] + bsc_ref[...]
    o_ref[...] = jnp.maximum(y + s, 0.0).astype(o_ref.dtype)


# --------------------------- pallas_call wrappers --------------------------- #

def conv1_call(slab, w_packed, groups, th, wout, cin_p, cout_p, dense_dtype,
               wsc=None, sc_tap=None):
    t, rows, pw, kc = slab.shape
    tm = th * wout
    has_proj = wsc is not None
    groups_k = tuple((oy, ox, p0, len(taps)) for (oy, ox, p0, taps) in groups)
    kernel = functools.partial(_conv1_kernel, groups_k, th, wout, cin_p,
                               sc_tap, has_proj)

    y_spec = pl.BlockSpec((None, tm, cout_p), lambda i: (i, 0, 0))
    st_spec = pl.BlockSpec((None, 1, cout_p), lambda i: (i, 0, 0))
    in_specs = [pl.BlockSpec((None, rows, pw, kc), lambda i: (i, 0, 0, 0)),
                pl.BlockSpec(w_packed.shape, lambda i: (0, 0))]
    inputs = [slab, w_packed]
    y_shape = jax.ShapeDtypeStruct((t, tm, cout_p), dense_dtype)
    st_shape = jax.ShapeDtypeStruct((t, 1, cout_p), jnp.float32)
    out_specs = [y_spec, st_spec, st_spec]
    out_shape = [y_shape, st_shape, st_shape]

    k_total = sum(len(taps) for (_, _, _, taps) in groups) * cin_p
    flops = 2 * t * tm * k_total * cout_p
    bytes_acc = (slab.size * slab.dtype.itemsize
                 + w_packed.size * w_packed.dtype.itemsize
                 + t * tm * cout_p * slab.dtype.itemsize
                 + 2 * t * cout_p * 4)

    if has_proj:
        in_specs.append(pl.BlockSpec(wsc.shape, lambda i: (0, 0)))
        inputs.append(wsc)
        out_specs += [y_spec, st_spec, st_spec]
        out_shape += [y_shape, st_shape, st_shape]
        flops += 2 * t * tm * cin_p * cout_p
        bytes_acc += (wsc.size * wsc.dtype.itemsize
                      + t * tm * cout_p * slab.dtype.itemsize
                      + 2 * t * cout_p * 4)

    return pl.pallas_call(
        kernel,
        grid=(t,),
        in_specs=in_specs,
        out_specs=tuple(out_specs),
        out_shape=tuple(out_shape),
        scratch_shapes=[pltpu.VMEM((tm, cout_p), jnp.float32)],
        compiler_params=_compiler_params(),
        cost_estimate=pl.CostEstimate(flops=int(flops), transcendentals=0,
                                      bytes_accessed=int(bytes_acc)),
    )(*inputs)


def conv2_call(slab, w_packed, scale1, shift1, groups, th, wout, cin_p, cout_p,
               n_ht, dense_dtype):
    t, rows, pw, kc = slab.shape
    tm = th * wout
    groups_k = tuple((oy, ox, p0, len(taps)) for (oy, ox, p0, taps) in groups)
    kernel = functools.partial(_conv2_bn_kernel, groups_k, th, wout, cin_p,
                               n_ht)

    y_spec = pl.BlockSpec((None, tm, cout_p), lambda i: (i, 0, 0))
    st_spec = pl.BlockSpec((None, 1, cout_p), lambda i: (i, 0, 0))
    vec_spec = pl.BlockSpec((1, cin_p), lambda i: (0, 0))

    k_total = sum(len(taps) for (_, _, _, taps) in groups) * cin_p
    flops = 2 * t * tm * k_total * cout_p
    bytes_acc = (slab.size * slab.dtype.itemsize
                 + w_packed.size * w_packed.dtype.itemsize
                 + t * tm * cout_p * slab.dtype.itemsize
                 + 2 * t * cout_p * 4)

    return pl.pallas_call(
        kernel,
        grid=(t,),
        in_specs=[pl.BlockSpec((None, rows, pw, kc), lambda i: (i, 0, 0, 0)),
                  pl.BlockSpec(w_packed.shape, lambda i: (0, 0)),
                  vec_spec, vec_spec],
        out_specs=(y_spec, st_spec, st_spec),
        out_shape=(jax.ShapeDtypeStruct((t, tm, cout_p), dense_dtype),
                   jax.ShapeDtypeStruct((t, 1, cout_p), jnp.float32),
                   jax.ShapeDtypeStruct((t, 1, cout_p), jnp.float32)),
        scratch_shapes=[pltpu.VMEM((rows, pw, cin_p), slab.dtype),
                        pltpu.VMEM((tm, cout_p), jnp.float32)],
        compiler_params=_compiler_params(),
        cost_estimate=pl.CostEstimate(flops=int(flops), transcendentals=0,
                                      bytes_accessed=int(bytes_acc)),
    )(slab, w_packed, scale1, shift1)


def affine_add_relu(y, sc, scale, shift):
    t, tm, cp = y.shape
    dense = pl.BlockSpec((None, tm, cp), lambda i: (i, 0, 0))
    vec = pl.BlockSpec((1, cp), lambda i: (0, 0))
    return pl.pallas_call(
        _affine_add_relu_kernel,
        grid=(t,),
        in_specs=[dense, dense, vec, vec],
        out_specs=dense,
        out_shape=jax.ShapeDtypeStruct((t, tm, cp), jnp.float32),
        compiler_params=_compiler_params(),
        cost_estimate=pl.CostEstimate(
            flops=int(4 * t * tm * cp), transcendentals=0,
            bytes_accessed=int(y.size * y.dtype.itemsize
                               + sc.size * sc.dtype.itemsize
                               + 4 * t * tm * cp)),
    )(y, sc, scale, shift)


def affine_proj_add_relu(y, ysc, scale, shift, scale_sc, shift_sc):
    t, tm, cp = y.shape
    dense = pl.BlockSpec((None, tm, cp), lambda i: (i, 0, 0))
    vec = pl.BlockSpec((1, cp), lambda i: (0, 0))
    return pl.pallas_call(
        _affine_proj_add_relu_kernel,
        grid=(t,),
        in_specs=[dense, dense, vec, vec, vec, vec],
        out_specs=dense,
        out_shape=jax.ShapeDtypeStruct((t, tm, cp), jnp.float32),
        compiler_params=_compiler_params(),
        cost_estimate=pl.CostEstimate(
            flops=int(6 * t * tm * cp), transcendentals=0,
            bytes_accessed=int(2 * y.size * y.dtype.itemsize + 4 * t * tm * cp)),
    )(y, ysc, scale, shift, scale_sc, shift_sc)


# ------------------------------- JAX glue ---------------------------------- #

def _round_up(x, m):
    return ((x + m - 1) // m) * m


def _pad_channels(x, c_to):
    c = x.shape[-1]
    if c == c_to:
        return x
    pad = [(0, 0)] * (x.ndim - 1) + [(0, c_to - c)]
    return jnp.pad(x, pad)


def _pad_vec(v, c_to):
    return _pad_channels(v.reshape(1, -1).astype(jnp.float32), c_to)


def _make_groups(ksize, stride):
    """Group conv taps that share a spatial offset into contiguous-phase runs."""
    by_off = {}
    for ky in range(ksize):
        for kx in range(ksize):
            off = (ky // stride, kx // stride)
            phase = (ky % stride) * stride + (kx % stride)
            by_off.setdefault(off, {})[phase] = (ky, kx)
    groups = []
    for (oy, ox) in sorted(by_off):
        ph_map = by_off[(oy, ox)]
        phases = sorted(ph_map)
        run = [phases[0]]
        for p in phases[1:]:
            if p == run[-1] + 1:
                run.append(p)
            else:
                groups.append((oy, ox, run[0], tuple(ph_map[q] for q in run)))
                run = [p]
        groups.append((oy, ox, run[0], tuple(ph_map[q] for q in run)))
    return groups


def _pack_conv_weights(w_oihw, groups, cin_p, cout_p, dtype):
    """(Cout, Cin, kh, kw) -> (sum_g ntaps_g*cin_p, cout_p) in group order."""
    cout, cin, _, _ = w_oihw.shape
    wt = jnp.transpose(w_oihw, (2, 3, 1, 0))                 # (kh, kw, cin, cout)
    wt = jnp.pad(wt, ((0, 0), (0, 0), (0, cin_p - cin), (0, cout_p - cout)))
    mats = [wt[ky, kx] for (_, _, _, taps) in groups for (ky, kx) in taps]
    return jnp.concatenate(mats, axis=0).astype(dtype)


def _w1x1_to_mat(w_oihw, cin_p, cout_p, dtype):
    wm = jnp.transpose(w_oihw[:, :, 0, 0], (1, 0))           # (cin, cout)
    cin, cout = wm.shape
    return jnp.pad(wm, ((0, cin_p - cin), (0, cout_p - cout))).astype(dtype)


def _pick_tile_rows(hout, wout, n_batch, target_rows):
    """Largest divisor of hout with th*wout <~ target_rows; keep grid >= 2."""
    cap = max(1, target_rows // max(wout, 1))
    divisors = [d for d in range(1, hout + 1) if hout % d == 0]
    fitting = [d for d in divisors if d <= cap]
    th = max(fitting) if fitting else 1
    # v7x megacore: give the "parallel" grid at least 2 steps to shard.
    if n_batch * (hout // th) < 2:
        smaller = [d for d in divisors if d < th]
        if smaller:
            th = max(smaller)
    return th
# TODO(synk): relax the divisor requirement via cdiv grids + masked tail tiles.


def _build_slab(x_nhwc, stride, ksize, pad, th):
    """Zero-pad spatially, space-to-depth by stride, cut into row-tile slabs."""
    n, h, w, c = x_nhwc.shape
    hout = (h + 2 * pad - ksize) // stride + 1
    wout = (w + 2 * pad - ksize) // stride + 1
    f = (ksize - 1) // stride
    ph, pw = hout + f, wout + f
    xp = jnp.pad(x_nhwc, ((0, 0),
                          (pad, ph * stride - h - pad),
                          (pad, pw * stride - w - pad),
                          (0, 0)))
    xs = xp.reshape(n, ph, stride, pw, stride, c)
    xs = jnp.transpose(xs, (0, 1, 3, 2, 4, 5)).reshape(n, ph, pw,
                                                       stride * stride * c)
    n_ht = hout // th
    if n_ht == 1:
        return xs
    tiles = [xs[:, i * th:i * th + th + f] for i in range(n_ht)]
    return jnp.stack(tiles, axis=1).reshape(n * n_ht, th + f, pw,
                                            stride * stride * c)


def _bn_scale_shift(s_part, q_part, gamma, beta, m):
    """Training-mode BN scale/shift from globally reduced per-tile partials."""
    inv_m = 1.0 / float(m)
    s_tot = jnp.sum(s_part, axis=0)                           # (1, Cp)
    q_tot = jnp.sum(q_part, axis=0)
    mean = s_tot * inv_m
    var = jnp.maximum(q_tot * inv_m - mean * mean, 0.0)
    scale = gamma * jax.lax.rsqrt(var + BN_EPS)
    shift = beta - mean * scale
    return scale, shift


def init_resblock_params(key, inchannel, outchannel, stride):
    ks = jax.random.split(key, 8)
    params = {
        "w1": 0.1 * jax.random.normal(ks[0], (outchannel, inchannel, 3, 3), jnp.float32),
        "g1": 1.0 + 0.1 * jax.random.normal(ks[1], (outchannel,), jnp.float32),
        "b1": 0.1 * jax.random.normal(ks[2], (outchannel,), jnp.float32),
        "w2": 0.1 * jax.random.normal(ks[3], (outchannel, outchannel, 3, 3), jnp.float32),
        "g2": 1.0 + 0.1 * jax.random.normal(ks[4], (outchannel,), jnp.float32),
        "b2": 0.1 * jax.random.normal(ks[5], (outchannel,), jnp.float32),
    }
    if stride != 1 or inchannel != outchannel:
        params["wsc"] = 0.1 * jax.random.normal(
            ks[6], (outchannel, inchannel, 1, 1), jnp.float32)
        params["gsc"] = 1.0 + 0.1 * jax.random.normal(ks[7], (outchannel,), jnp.float32)
        params["bsc"] = jnp.zeros((outchannel,), jnp.float32)
    return params


def res_block_forward(x_nchw, params, stride, *,
                      compute_dtype=DEFAULT_COMPUTE_DTYPE):
    """ResBlock forward. x_nchw: (N, C_in, H, W) -> (N, C_out, H_out, W_out)."""
    x = jnp.transpose(x_nchw, (0, 2, 3, 1)).astype(jnp.float32)   # NCHW -> NHWC
    n, h, w, cin = x.shape
    cout = params["w1"].shape[0]
    cin_p = _round_up(cin, LANE)
    cout_p = _round_up(cout, LANE)
    has_proj = (stride != 1) or (cin != cout)

    hout = (h + 2 - 3) // stride + 1
    wout = (w + 2 - 3) // stride + 1
    th = _pick_tile_rows(hout, wout, n, TARGET_TILE_ROWS)
    n_ht = hout // th
    t = n * n_ht
    tm = th * wout
    m = t * tm                                # = N*Hout*Wout (BN batch size)

    xq = _pad_channels(x, cin_p)              # f32 copy (identity shortcut add)
    xq_mm = xq.astype(compute_dtype)          # bf16 copy for MXU / DMA

    groups1 = _make_groups(3, stride)
    groups2 = _make_groups(3, 1)
    w1 = _pack_conv_weights(params["w1"], groups1, cin_p, cout_p, compute_dtype)
    w2 = _pack_conv_weights(params["w2"], groups2, cout_p, cout_p, compute_dtype)
    g1, b1 = _pad_vec(params["g1"], cout_p), _pad_vec(params["b1"], cout_p)
    g2, b2 = _pad_vec(params["g2"], cout_p), _pad_vec(params["b2"], cout_p)

    # conv1 (3x3/stride) [+ fused 1x1 projection shortcut] + BN partial stats.
    slab1 = _build_slab(xq_mm, stride, 3, 1, th)
    if has_proj:
        wsc = _w1x1_to_mat(params["wsc"], cin_p, cout_p, compute_dtype)
        sc_tap = (1 // stride, 1 // stride,
                  (1 % stride) * stride + (1 % stride))
        y1, s1, q1, ysc, ssc, qsc = conv1_call(
            slab1, w1, groups1, th, wout, cin_p, cout_p, compute_dtype,
            wsc=wsc, sc_tap=sc_tap)
    else:
        y1, s1, q1 = conv1_call(slab1, w1, groups1, th, wout, cin_p, cout_p,
                                compute_dtype)

    # BN1 scale/shift from globally reduced partials (tiny XLA op).
    scale1, shift1 = _bn_scale_shift(s1, q1, g1, b1, m)

    # conv2 (3x3/1) with BN1-apply + ReLU fused into its prologue.
    slab2 = _build_slab(y1.reshape(n, hout, wout, cout_p), 1, 3, 1, th)
    y2, s2, q2 = conv2_call(slab2, w2, scale1, shift1, groups2, th, wout,
                            cout_p, cout_p, n_ht, compute_dtype)

    scale2, shift2 = _bn_scale_shift(s2, q2, g2, b2, m)

    # BN2 apply + shortcut(-BN) + residual add + final ReLU in one fused pass.
    if has_proj:
        gsc, bsc = _pad_vec(params["gsc"], cout_p), _pad_vec(params["bsc"], cout_p)
        scale_sc, shift_sc = _bn_scale_shift(ssc, qsc, gsc, bsc, m)
        out = affine_proj_add_relu(y2, ysc, scale2, shift2, scale_sc, shift_sc)
    else:
        sc = xq.reshape(t, tm, cout_p)        # identity: cin==cout, stride==1
        out = affine_add_relu(y2, sc, scale2, shift2)

    out = out.reshape(n, hout, wout, cout_p)[:, :, :, :cout]
    return jnp.transpose(out, (0, 3, 1, 2))                      # NHWC -> NCHW


# ------------------------- pure-JAX reference check ------------------------- #

def _ref_forward(x_nchw, params, stride):
    def conv(x, w, s, p):
        return jax.lax.conv_general_dilated(
            x, w, (s, s), ((p, p), (p, p)),
            dimension_numbers=("NCHW", "OIHW", "NCHW"),
            precision=jax.lax.Precision.HIGHEST)

    def bn(y, g, b):
        mean = jnp.mean(y, axis=(0, 2, 3), keepdims=True)
        var = jnp.mean(jnp.square(y - mean), axis=(0, 2, 3), keepdims=True)
        yn = (y - mean) * jax.lax.rsqrt(var + BN_EPS)
        return yn * g.reshape(1, -1, 1, 1) + b.reshape(1, -1, 1, 1)

    x = x_nchw.astype(jnp.float32)
    out = jax.nn.relu(bn(conv(x, params["w1"], stride, 1), params["g1"], params["b1"]))
    out = bn(conv(out, params["w2"], 1, 1), params["g2"], params["b2"])
    if "wsc" in params:
        sc = bn(conv(x, params["wsc"], stride, 0), params["gsc"], params["bsc"])
    else:
        sc = x
    return jax.nn.relu(out + sc)


if __name__ == "__main__":
    key = jax.random.PRNGKey(0)
    kx, kp1, kp2 = jax.random.split(key, 3)

    x = jax.random.normal(kx, (2, 4, 16, 16), jnp.float32)   # NCHW, like PyTorch

    # Case 1: stride=2 + channel change -> projection shortcut (1x1 conv + BN).
    params = init_resblock_params(kp1, inchannel=4, outchannel=8, stride=2)
    ref1 = _ref_forward(x, params, 2)

    # Exactness check: the very same kernels in f32 mode.
    y_f32 = jax.block_until_ready(
        res_block_forward(x, params, 2, compute_dtype=jnp.float32))
    assert y_f32.shape == (2, 8, 8, 8)
    err = float(jnp.max(jnp.abs(y_f32 - ref1)))
    assert err < 5e-2, f"projection-block (f32) mismatch: {err}"

    # Performance mode (default): bf16 MXU inputs + bf16 intermediates.
    y_bf = jax.block_until_ready(res_block_forward(x, params, 2))
    assert y_bf.shape == (2, 8, 8, 8)
    assert bool(jnp.all(y_bf >= 0.0))                        # final ReLU
    d1 = jnp.abs(y_bf.astype(jnp.float32) - ref1)
    max1, mean1 = float(jnp.max(d1)), float(jnp.mean(d1))
    assert max1 < 4e-1 and mean1 < 6e-2, \
        f"projection-block (bf16) mismatch: max={max1} mean={mean1}"

    # Case 2: stride=1, same channels -> identity shortcut.
    params_id = init_resblock_params(kp2, inchannel=4, outchannel=4, stride=1)
    ref2 = _ref_forward(x, params_id, 1)

    y2_f32 = jax.block_until_ready(
        res_block_forward(x, params_id, 1, compute_dtype=jnp.float32))
    assert y2_f32.shape == (2, 4, 16, 16)
    err2 = float(jnp.max(jnp.abs(y2_f32 - ref2)))
    assert err2 < 5e-2, f"identity-block (f32) mismatch: {err2}"

    y2_bf = jax.block_until_ready(res_block_forward(x, params_id, 1))
    assert bool(jnp.all(y2_bf >= 0.0))
    d2 = jnp.abs(y2_bf.astype(jnp.float32) - ref2)
    max2, mean2 = float(jnp.max(d2)), float(jnp.mean(d2))
    assert max2 < 4e-1 and mean2 < 6e-2, \
        f"identity-block (bf16) mismatch: max={max2} mean={mean2}"

    print("KERNEL_OK")
</pallas_src>

<mosaic_0001>
module attributes {stable_mosaic.version = 11 : i64} {
  func.func @_conv1_kernel(%arg0: i32, %arg1: memref<1x9x9x512xf32, #tpu.memory_space<vmem>>, %arg2: memref<1152x128xf32, #tpu.memory_space<vmem>>, %arg3: memref<128x128xf32, #tpu.memory_space<vmem>>, %arg4: memref<1x64x128xf32, #tpu.memory_space<vmem>>, %arg5: memref<1x1x128xf32, #tpu.memory_space<vmem>>, %arg6: memref<1x1x128xf32, #tpu.memory_space<vmem>>, %arg7: memref<1x64x128xf32, #tpu.memory_space<vmem>>, %arg8: memref<1x1x128xf32, #tpu.memory_space<vmem>>, %arg9: memref<1x1x128xf32, #tpu.memory_space<vmem>>, %arg10: memref<64x128xf32, #tpu.memory_space<vmem>>) attributes {dimension_semantics = [#tpu.dimension_semantics<parallel>], iteration_bounds = array<i64: 2>, scalar_prefetch = 0 : i64, scratch_operands = 1 : i64, tpu.core_type = #tpu.core_type<tc>, window_params = [{transform_indices = @transform_0, window_bounds = array<i64: 1, 9, 9, 512>}, {pipeline_mode = #tpu.pipeline_mode<synchronous>, transform_indices = @transform_1, window_bounds = array<i64: 1152, 128>}, {pipeline_mode = #tpu.pipeline_mode<synchronous>, transform_indices = @transform_2, window_bounds = array<i64: 128, 128>}, {transform_indices = @transform_3, window_bounds = array<i64: 1, 64, 128>}, {transform_indices = @transform_4, window_bounds = array<i64: 1, 1, 128>}, {transform_indices = @transform_5, window_bounds = array<i64: 1, 1, 128>}, {transform_indices = @transform_6, window_bounds = array<i64: 1, 64, 128>}, {transform_indices = @transform_7, window_bounds = array<i64: 1, 1, 128>}, {transform_indices = @transform_8, window_bounds = array<i64: 1, 1, 128>}]} {
    %c0 = arith.constant 0 : index
    %c0_0 = arith.constant 0 : index
    %c0_1 = arith.constant 0 : index
    %c0_2 = arith.constant 0 : index
    %0 = vector.load %arg1[%c0, %c0_0, %c0_1, %c0_2] : memref<1x9x9x512xf32, #tpu.memory_space<vmem>>, vector<1x8x8x512xf32>
    %1 = vector.shape_cast %0 : vector<1x8x8x512xf32> to vector<8x8x512xf32>
    %2 = vector.shape_cast %1 : vector<8x8x512xf32> to vector<64x512xf32>
    %c0_3 = arith.constant 0 : index
    %c0_4 = arith.constant 0 : index
    %3 = vector.load %arg2[%c0_3, %c0_4] : memref<1152x128xf32, #tpu.memory_space<vmem>>, vector<512x128xf32>
    %cst = arith.constant dense<0.000000e+00> : vector<64x128xf32>
    %4 = tpu.matmul %2, %3, %cst {dimension_numbers = #tpu.dot_dimension_numbers<[1], [0], [0], [1], [0, 0, 1, 1], [], []>} : vector<64x512xf32>, vector<512x128xf32>, vector<64x128xf32> -> vector<64x128xf32>
    %c0_5 = arith.constant 0 : index
    %c0_6 = arith.constant 0 : index
    %5 = vector.load %arg10[%c0_5, %c0_6] : memref<64x128xf32, #tpu.memory_space<vmem>>, vector<64x128xf32>
    tpu.vector_store %arg10[%c0_5, %c0_6], %4 {strides = array<i32>} : memref<64x128xf32, #tpu.memory_space<vmem>>, vector<64x128xf32>,
    %c0_7 = arith.constant 0 : index
    %c0_8 = arith.constant 0 : index
    %c1 = arith.constant 1 : index
    %c0_9 = arith.constant 0 : index
    %6 = vector.load %arg1[%c0_7, %c0_8, %c1, %c0_9] : memref<1x9x9x512xf32, #tpu.memory_space<vmem>>, vector<1x8x8x128xf32>
    %7 = vector.shape_cast %6 : vector<1x8x8x128xf32> to vector<8x8x128xf32>
    %8 = vector.shape_cast %7 : vector<8x8x128xf32> to vector<64x128xf32>
    %c512 = arith.constant 512 : index
    %c0_10 = arith.constant 0 : index
    %9 = vector.load %arg2[%c512, %c0_10] : memref<1152x128xf32, #tpu.memory_space<vmem>>, vector<128x128xf32>
    %cst_11 = arith.constant dense<0.000000e+00> : vector<64x128xf32>
    %10 = tpu.matmul %8, %9, %cst_11 {dimension_numbers = #tpu.dot_dimension_numbers<[1], [0], [0], [1], [0, 0, 1, 1], [], []>} : vector<64x128xf32>, vector<128x128xf32>, vector<64x128xf32> -> vector<64x128xf32>
    %c0_12 = arith.constant 0 : index
    %c0_13 = arith.constant 0 : index
    %11 = vector.load %arg10[%c0_12, %c0_13] : memref<64x128xf32, #tpu.memory_space<vmem>>, vector<64x128xf32>
    %12 = arith.addf %11, %10 : vector<64x128xf32>
    %c0_14 = arith.constant 0 : index
    %c0_15 = arith.constant 0 : index
    %13 = vector.load %arg10[%c0_14, %c0_15] : memref<64x128xf32, #tpu.memory_space<vmem>>, vector<64x128xf32>
    tpu.vector_store %arg10[%c0_14, %c0_15], %12 {strides = array<i32>} : memref<64x128xf32, #tpu.memory_space<vmem>>, vector<64x128xf32>,
    %c0_16 = arith.constant 0 : index
    %c0_17 = arith.constant 0 : index
    %c1_18 = arith.constant 1 : index
    %c256 = arith.constant 256 : index
    %14 = vector.load %arg1[%c0_16, %c0_17, %c1_18, %c256] : memref<1x9x9x512xf32, #tpu.memory_space<vmem>>, vector<1x8x8x128xf32>
    %15 = vector.shape_cast %14 : vector<1x8x8x128xf32> to vector<8x8x128xf32>
    %16 = vector.shape_cast %15 : vector<8x8x128xf32> to vector<64x128xf32>
    %c640 = arith.constant 640 : index
    %c0_19 = arith.constant 0 : index
    %17 = vector.load %arg2[%c640, %c0_19] : memref<1152x128xf32, #tpu.memory_space<vmem>>, vector<128x128xf32>
    %cst_20 = arith.constant dense<0.000000e+00> : vector<64x128xf32>
    %18 = tpu.matmul %16, %17, %cst_20 {dimension_numbers = #tpu.dot_dimension_numbers<[1], [0], [0], [1], [0, 0, 1, 1], [], []>} : vector<64x128xf32>, vector<128x128xf32>, vector<64x128xf32> -> vector<64x128xf32>
    %c0_21 = arith.constant 0 : index
    %c0_22 = arith.constant 0 : index
    %19 = vector.load %arg10[%c0_21, %c0_22] : memref<64x128xf32, #tpu.memory_space<vmem>>, vector<64x128xf32>
    %20 = arith.addf %19, %18 : vector<64x128xf32>
    %c0_23 = arith.constant 0 : index
    %c0_24 = arith.constant 0 : index
    %21 = vector.load %arg10[%c0_23, %c0_24] : memref<64x128xf32, #tpu.memory_space<vmem>>, vector<64x128xf32>
    tpu.vector_store %arg10[%c0_23, %c0_24], %20 {strides = array<i32>} : memref<64x128xf32, #tpu.memory_space<vmem>>, vector<64x128xf32>,
    %c0_25 = arith.constant 0 : index
    %c1_26 = arith.constant 1 : index
    %c0_27 = arith.constant 0 : index
    %c0_28 = arith.constant 0 : index
    %22 = vector.load %arg1[%c0_25, %c1_26, %c0_27, %c0_28] : memref<1x9x9x512xf32, #tpu.memory_space<vmem>>, vector<1x8x8x256xf32>
    %23 = vector.shape_cast %22 : vector<1x8x8x256xf32> to vector<8x8x256xf32>
    %24 = vector.shape_cast %23 : vector<8x8x256xf32> to vector<64x256xf32>
    %c768 = arith.constant 768 : index
    %c0_29 = arith.constant 0 : index
    %25 = vector.load %arg2[%c768, %c0_29] : memref<1152x128xf32, #tpu.memory_space<vmem>>, vector<256x128xf32>
    %cst_30 = arith.constant dense<0.000000e+00> : vector<64x128xf32>
    %26 = tpu.matmul %24, %25, %cst_30 {dimension_numbers = #tpu.dot_dimension_numbers<[1], [0], [0], [1], [0, 0, 1, 1], [], []>} : vector<64x256xf32>, vector<256x128xf32>, vector<64x128xf32> -> vector<64x128xf32>
    %c0_31 = arith.constant 0 : index
    %c0_32 = arith.constant 0 : index
    %27 = vector.load %arg10[%c0_31, %c0_32] : memref<64x128xf32, #tpu.memory_space<vmem>>, vector<64x128xf32>
    %28 = arith.addf %27, %26 : vector<64x128xf32>
    %c0_33 = arith.constant 0 : index
    %c0_34 = arith.constant 0 : index
    %29 = vector.load %arg10[%c0_33, %c0_34] : memref<64x128xf32, #tpu.memory_space<vmem>>, vector<64x128xf32>
    tpu.vector_store %arg10[%c0_33, %c0_34], %28 {strides = array<i32>} : memref<64x128xf32, #tpu.memory_space<vmem>>, vector<64x128xf32>,
    %c0_35 = arith.constant 0 : index
    %c1_36 = arith.constant 1 : index
    %c1_37 = arith.constant 1 : index
    %c0_38 = arith.constant 0 : index
    %30 = vector.load %arg1[%c0_35, %c1_36, %c1_37, %c0_38] : memref<1x9x9x512xf32, #tpu.memory_space<vmem>>, vector<1x8x8x128xf32>
    %31 = vector.shape_cast %30 : vector<1x8x8x128xf32> to vector<8x8x128xf32>
    %32 = vector.shape_cast %31 : vector<8x8x128xf32> to vector<64x128xf32>
    %c1024 = arith.constant 1024 : index
    %c0_39 = arith.constant 0 : index
    %33 = vector.load %arg2[%c1024, %c0_39] : memref<1152x128xf32, #tpu.memory_space<vmem>>, vector<128x128xf32>
    %cst_40 = arith.constant dense<0.000000e+00> : vector<64x128xf32>
    %34 = tpu.matmul %32, %33, %cst_40 {dimension_numbers = #tpu.dot_dimension_numbers<[1], [0], [0], [1], [0, 0, 1, 1], [], []>} : vector<64x128xf32>, vector<128x128xf32>, vector<64x128xf32> -> vector<64x128xf32>
    %c0_41 = arith.constant 0 : index
    %c0_42 = arith.constant 0 : index
    %35 = vector.load %arg10[%c0_41, %c0_42] : memref<64x128xf32, #tpu.memory_space<vmem>>, vector<64x128xf32>
    %36 = arith.addf %35, %34 : vector<64x128xf32>
    %c0_43 = arith.constant 0 : index
    %c0_44 = arith.constant 0 : index
    %37 = vector.load %arg10[%c0_43, %c0_44] : memref<64x128xf32, #tpu.memory_space<vmem>>, vector<64x128xf32>
    tpu.vector_store %arg10[%c0_43, %c0_44], %36 {strides = array<i32>} : memref<64x128xf32, #tpu.memory_space<vmem>>, vector<64x128xf32>,
    %c0_45 = arith.constant 0 : index
    %c0_46 = arith.constant 0 : index
    %38 = vector.load %arg10[%c0_45, %c0_46] : memref<64x128xf32, #tpu.memory_space<vmem>>, vector<64x128xf32>
    %c0_47 = arith.constant 0 : index
    %c0_48 = arith.constant 0 : index
    %c0_49 = arith.constant 0 : index
    %39 = vector.load %arg4[%c0_47, %c0_48, %c0_49] : memref<1x64x128xf32, #tpu.memory_space<vmem>>, vector<1x64x128xf32>
    %40 = vector.shape_cast %39 : vector<1x64x128xf32> to vector<64x128xf32>
    %41 = vector.shape_cast %38 : vector<64x128xf32> to vector<1x64x128xf32>
    tpu.vector_store %arg4[%c0_47, %c0_48, %c0_49], %41 {strides = array<i32>} : memref<1x64x128xf32, #tpu.memory_space<vmem>>, vector<1x64x128xf32>,
    %cst_50 = arith.constant dense<0.000000e+00> : vector<128xf32>
    %42 = vector.multi_reduction <add>, %38, %cst_50 [0] : vector<64x128xf32> to vector<128xf32>
    %43 = vector.shape_cast %42 : vector<128xf32> to vector<1x128xf32>
    %c0_51 = arith.constant 0 : index
    %c0_52 = arith.constant 0 : index
    %c0_53 = arith.constant 0 : index
    %44 = vector.load %arg5[%c0_51, %c0_52, %c0_53] : memref<1x1x128xf32, #tpu.memory_space<vmem>>, vector<1x1x128xf32>
    %45 = vector.shape_cast %44 : vector<1x1x128xf32> to vector<1x128xf32>
    %46 = vector.shape_cast %43 : vector<1x128xf32> to vector<1x1x128xf32>
    tpu.vector_store %arg5[%c0_51, %c0_52, %c0_53], %46 {strides = array<i32>} : memref<1x1x128xf32, #tpu.memory_space<vmem>>, vector<1x1x128xf32>,
    %47 = arith.mulf %38, %38 : vector<64x128xf32>
    %cst_54 = arith.constant dense<0.000000e+00> : vector<128xf32>
    %48 = vector.multi_reduction <add>, %47, %cst_54 [0] : vector<64x128xf32> to vector<128xf32>
    %49 = vector.shape_cast %48 : vector<128xf32> to vector<1x128xf32>
    %c0_55 = arith.constant 0 : index
    %c0_56 = arith.constant 0 : index
    %c0_57 = arith.constant 0 : index
    %50 = vector.load %arg6[%c0_55, %c0_56, %c0_57] : memref<1x1x128xf32, #tpu.memory_space<vmem>>, vector<1x1x128xf32>
    %51 = vector.shape_cast %50 : vector<1x1x128xf32> to vector<1x128xf32>
    %52 = vector.shape_cast %49 : vector<1x128xf32> to vector<1x1x128xf32>
    tpu.vector_store %arg6[%c0_55, %c0_56, %c0_57], %52 {strides = array<i32>} : memref<1x1x128xf32, #tpu.memory_space<vmem>>, vector<1x1x128xf32>,
    %c0_58 = arith.constant 0 : index
    %c0_59 = arith.constant 0 : index
    %c0_60 = arith.constant 0 : index
    %c384 = arith.constant 384 : index
    %53 = vector.load %arg1[%c0_58, %c0_59, %c0_60, %c384] : memref<1x9x9x512xf32, #tpu.memory_space<vmem>>, vector<1x8x8x128xf32>
    %54 = vector.shape_cast %53 : vector<1x8x8x128xf32> to vector<8x8x128xf32>
    %55 = vector.shape_cast %54 : vector<8x8x128xf32> to vector<64x128xf32>
    %c0_61 = arith.constant 0 : index
    %c0_62 = arith.constant 0 : index
    %56 = vector.load %arg3[%c0_61, %c0_62] : memref<128x128xf32, #tpu.memory_space<vmem>>, vector<128x128xf32>
    %cst_63 = arith.constant dense<0.000000e+00> : vector<64x128xf32>
    %57 = tpu.matmul %55, %56, %cst_63 {dimension_numbers = #tpu.dot_dimension_numbers<[1], [0], [0], [1], [0, 0, 1, 1], [], []>} : vector<64x128xf32>, vector<128x128xf32>, vector<64x128xf32> -> vector<64x128xf32>
    %c0_64 = arith.constant 0 : index
    %c0_65 = arith.constant 0 : index
    %c0_66 = arith.constant 0 : index
    %58 = vector.load %arg7[%c0_64, %c0_65, %c0_66] : memref<1x64x128xf32, #tpu.memory_space<vmem>>, vector<1x64x128xf32>
    %59 = vector.shape_cast %58 : vector<1x64x128xf32> to vector<64x128xf32>
    %60 = vector.shape_cast %57 : vector<64x128xf32> to vector<1x64x128xf32>
    tpu.vector_store %arg7[%c0_64, %c0_65, %c0_66], %60 {strides = array<i32>} : memref<1x64x128xf32, #tpu.memory_space<vmem>>, vector<1x64x128xf32>,
    %cst_67 = arith.constant dense<0.000000e+00> : vector<128xf32>
    %61 = vector.multi_reduction <add>, %57, %cst_67 [0] : vector<64x128xf32> to vector<128xf32>
    %62 = vector.shape_cast %61 : vector<128xf32> to vector<1x128xf32>
    %c0_68 = arith.constant 0 : index
    %c0_69 = arith.constant 0 : index
    %c0_70 = arith.constant 0 : index
    %63 = vector.load %arg8[%c0_68, %c0_69, %c0_70] : memref<1x1x128xf32, #tpu.memory_space<vmem>>, vector<1x1x128xf32>
    %64 = vector.shape_cast %63 : vector<1x1x128xf32> to vector<1x128xf32>
    %65 = vector.shape_cast %62 : vector<1x128xf32> to vector<1x1x128xf32>
    tpu.vector_store %arg8[%c0_68, %c0_69, %c0_70], %65 {strides = array<i32>} : memref<1x1x128xf32, #tpu.memory_space<vmem>>, vector<1x1x128xf32>,
    %66 = arith.mulf %57, %57 : vector<64x128xf32>
    %cst_71 = arith.constant dense<0.000000e+00> : vector<128xf32>
    %67 = vector.multi_reduction <add>, %66, %cst_71 [0] : vector<64x128xf32> to vector<128xf32>
    %68 = vector.shape_cast %67 : vector<128xf32> to vector<1x128xf32>
    %c0_72 = arith.constant 0 : index
    %c0_73 = arith.constant 0 : index
    %c0_74 = arith.constant 0 : index
    %69 = vector.load %arg9[%c0_72, %c0_73, %c0_74] : memref<1x1x128xf32, #tpu.memory_space<vmem>>, vector<1x1x128xf32>
    %70 = vector.shape_cast %69 : vector<1x1x128xf32> to vector<1x128xf32>
    %71 = vector.shape_cast %68 : vector<1x128xf32> to vector<1x1x128xf32>
    tpu.vector_store %arg9[%c0_72, %c0_73, %c0_74], %71 {strides = array<i32>} : memref<1x1x128xf32, #tpu.memory_space<vmem>>, vector<1x1x128xf32>,
    return
  }
  func.func @transform_0(%arg0: i32) -> (i32, i32, i32, i32) {
    %c0_i32 = arith.constant 0 : i32
    %c0_i32_0 = arith.constant 0 : i32
    %c0_i32_1 = arith.constant 0 : i32
    %c0_i32_2 = arith.constant 0 : i32
    return %arg0, %c0_i32, %c0_i32_0, %c0_i32_1 : i32, i32, i32, i32
  }
  func.func @transform_1(%arg0: i32) -> (i32, i32) {
    %c0_i32 = arith.constant 0 : i32
    %c0_i32_0 = arith.constant 0 : i32
    %c0_i32_1 = arith.constant 0 : i32
    return %c0_i32, %c0_i32_0 : i32, i32
  }
  func.func @transform_2(%arg0: i32) -> (i32, i32) {
    %c0_i32 = arith.constant 0 : i32
    %c0_i32_0 = arith.constant 0 : i32
    %c0_i32_1 = arith.constant 0 : i32
    return %c0_i32, %c0_i32_0 : i32, i32
  }
  func.func @transform_3(%arg0: i32) -> (i32, i32, i32) {
    %c0_i32 = arith.constant 0 : i32
    %c0_i32_0 = arith.constant 0 : i32
    %c0_i32_1 = arith.constant 0 : i32
    return %arg0, %c0_i32, %c0_i32_0 : i32, i32, i32
  }
  func.func @transform_4(%arg0: i32) -> (i32, i32, i32) {
    %c0_i32 = arith.constant 0 : i32
    %c0_i32_0 = arith.constant 0 : i32
    %c0_i32_1 = arith.constant 0 : i32
    return %arg0, %c0_i32, %c0_i32_0 : i32, i32, i32
  }
  func.func @transform_5(%arg0: i32) -> (i32, i32, i32) {
    %c0_i32 = arith.constant 0 : i32
    %c0_i32_0 = arith.constant 0 : i32
    %c0_i32_1 = arith.constant 0 : i32
    return %arg0, %c0_i32, %c0_i32_0 : i32, i32, i32
  }
  func.func @transform_6(%arg0: i32) -> (i32, i32, i32) {
    %c0_i32 = arith.constant 0 : i32
    %c0_i32_0 = arith.constant 0 : i32
    %c0_i32_1 = arith.constant 0 : i32
    return %arg0, %c0_i32, %c0_i32_0 : i32, i32, i32
  }
  func.func @transform_7(%arg0: i32) -> (i32, i32, i32) {
    %c0_i32 = arith.constant 0 : i32
    %c0_i32_0 = arith.constant 0 : i32
    %c0_i32_1 = arith.constant 0 : i32
    return %arg0, %c0_i32, %c0_i32_0 : i32, i32, i32
  }
  func.func @transform_8(%arg0: i32) -> (i32, i32, i32) {
    %c0_i32 = arith.constant 0 : i32
    %c0_i32_0 = arith.constant 0 : i32
    %c0_i32_1 = arith.constant 0 : i32
    return %arg0, %c0_i32, %c0_i32_0 : i32, i32, i32
  }
}

</mosaic_0001>

<llo_original>
// kernel: tpu_custom_call.1
$region0: #{tpu_custom_call.1}
  #allocation0 [shape = 'u32[]', space=smem, size = 0x4, offset = 0x4, fixed_abs, tag = 'smem constant byte address 0x4 - core index']
  #allocation1 [shape = 'u32[144,128]{1,0:T(1,128)}', space=vmem, size = 0x12000, scoped, tag = 'internal scratch']
  #allocation2 [shape = 'f32[64,128]{1,0:T(8,128)}', space=vmem, size = 0x8000, scoped, tag = 'scratch operand']
  %s0 = inlined_call_operand.vmem [shape: f32[2,9,9,512], index: 0, kind: input, shape index: {}]
  %s1 = inlined_call_operand.vmem [shape: f32[1152,128], index: 1, kind: input, shape index: {}]
  %s2 = inlined_call_operand.vmem [shape: f32[128,128], index: 2, kind: input, shape index: {}]
  %s3 = inlined_call_operand.hbm [shape: f32[2,64,128], index: 3, kind: output, shape index: {0}]
  %s4 = inlined_call_operand.hbm [shape: f32[2,1,128], index: 4, kind: output, shape index: {1}]
  %s5 = inlined_call_operand.hbm [shape: f32[2,1,128], index: 5, kind: output, shape index: {2}]
  %s6 = inlined_call_operand.hbm [shape: f32[2,64,128], index: 6, kind: output, shape index: {3}]
  %s7 = inlined_call_operand.hbm [shape: f32[2,1,128], index: 7, kind: output, shape index: {4}]
  %s8 = inlined_call_operand.hbm [shape: f32[2,1,128], index: 8, kind: output, shape index: {5}]
  %9 = xla_tuple %s3, %s4, %s5, %s6, %s7, %s8
  %s10 = sld [smem:[#allocation0]]
  $region85: #{tpu_custom_call.1} parent=0
    _
  %s12 = ssub.s32 1, %s10
  %s13 = scalar_select 0, %s12, %s10
  $region1: #{tpu_custom_call.1} parent=0
    #allocation3 [shape = 'u8[65536]{0}', space=vmem, size = 0x10000, scoped, tag = 'output window, operand 0']
    #allocation4 [shape = 's32[2]{0}', space=sflag, size = 0x8, scoped, tag = 'scoped memory for tpu_custom_call.1']
    #allocation5 [shape = 'u8[1024]{0}', space=vmem, size = 0x400, scoped, tag = 'output window, operand 1']
    #allocation6 [shape = 's32[2]{0}', space=sflag, size = 0x8, scoped, tag = 'scoped memory for tpu_custom_call.1']
    #allocation7 [shape = 'u8[1024]{0}', space=vmem, size = 0x400, scoped, tag = 'output window, operand 2']
    #allocation8 [shape = 'u8[65536]{0}', space=vmem, size = 0x10000, scoped, tag = 'output window, operand 3']
    #allocation9 [shape = 's32[2]{0}', space=sflag, size = 0x8, scoped, tag = 'scoped memory for tpu_custom_call.1']
    #allocation10 [shape = 'u8[1024]{0}', space=vmem, size = 0x400, scoped, tag = 'output window, operand 4']
    #allocation11 [shape = 'u8[1024]{0}', space=vmem, size = 0x400, scoped, tag = 'output window, operand 5']
    #allocation12 [shape = 's32[2]{0}', space=sflag, size = 0x8, scoped, tag = 'scoped memory for tpu_custom_call.1']
    %14 = vsyncpa [#allocation4], 0
    %s15 = scalar_lea.sflag [#allocation4], 1
    %16 = vsyncpa %s15, 0
    %17 = vsyncpa [#allocation6], 0
    %s18 = scalar_lea.sflag [#allocation6], 1
    %19 = vsyncpa %s18, 0
    %20 = vsyncpa [#allocation9], 0
    %s21 = scalar_lea.sflag [#allocation9], 1
    %22 = vsyncpa %s21, 0
    %23 = vsyncpa [#allocation12], 0
    %s24 = scalar_lea.sflag [#allocation12], 1
    %25 = vsyncpa %s24, 0
    loop: start=0, step=1, limit=4
    $region2: #{tpu_custom_call.1} parent=1 // loop_pre_header
      _
    $region3: #{tpu_custom_call.1} parent=1 // loop_header
      %s27 = sphi 0, %s31
      %p28 = scmp.ge.s32.totalorder %s27, 4
      %s37 = sphi 0, %s39
      %s40 = sphi 0, %s37
      %s41 = sphi 0, %s40
      %s57 = sphi 0, %s41
      %s61 = sphi 0, %s61
      %s63 = sphi 0, %s61
      %s64 = sphi 0, %s63
      %s78 = sphi 0, %s64
      %s82 = sphi 0, %s82
      %s84 = sphi 0, %s82
      %s85 = sphi 0, %s84
      %s99 = sphi 0, %s85
      %s105 = sphi 0, %s107
      %s108 = sphi 0, %s105
      %s109 = sphi 0, %s108
      %s125 = sphi 0, %s109
      %s131 = sphi 0, %s133
      %s134 = sphi 0, %s131
      %s135 = sphi 0, %s134
      %s151 = sphi 0, %s135
      %s157 = sphi 0, %s159
      %s160 = sphi 0, %s157
      %s161 = sphi 0, %s160
      %s177 = sphi 0, %s161
      %s183 = sphi 0, %s185
      %s186 = sphi 0, %s183
      %s187 = sphi 0, %s186
      %s203 = sphi 0, %s187
      %s209 = sphi 0, %s211
      %s212 = sphi 0, %s209
      %s213 = sphi 0, %s212
      %s229 = sphi 0, %s213
      %s235 = sphi 0, %s237
      %s238 = sphi 0, %s235
      %s239 = sphi 0, %s238
      %s255 = sphi 0, %s239
    $region4: #{tpu_custom_call.1} parent=1 // loop_header_branch
      %30 = sbr.rel (%p28) target = $region8
    $region5: #{tpu_custom_call.1} parent=1 // loop_body
      %s32 = ssub.s32 %s27, 1
      %s33 = ssub.s32 %s27, 2
      %s34 = sadd.s32 %s27, 1
      %s35 = ssub.s32 %s27, %s34
      %p36 = scmp.eq.s32.totalorder %s35, 0
      %s38 = sadd.s32 %s37, 1
      %s39 = scalar_select %p36, %s37, %s38
      %p42 = pneg %p36
      %p43 = scmp.eq.s32.totalorder %s27, 1
      %p44 = por %p42, %p43
      %p45 = scmp.ne.s32.totalorder %s37, %s40
      %p46 = scmp.eq.s32.totalorder %s27, 0
      %p47 = por %p45, %p46
      %p48 = scmp.ne.s32.totalorder %s37, %s40
      %p49 = scmp.eq.s32.totalorder %s32, 1
      %p50 = por %p48, %p49
      %p51 = scmp.ne.s32.totalorder %s40, %s41
      %p52 = scmp.eq.s32.totalorder %s32, 0
      %p53 = por %p51, %p52
      %p54 = scmp.ne.s32.totalorder %s40, %s41
      %p55 = scmp.eq.s32.totalorder %s33, 1
      %p56 = por %p54, %p55
      %p58 = scmp.ne.s32.totalorder %s41, %s57
      %p59 = scmp.eq.s32.totalorder %s33, 0
      %p60 = por %p58, %p59
      %s62 = sadd.s32 %s61, 1
      %p65 = scmp.eq.s32.totalorder %s27, 1
      %p66 = scmp.ne.s32.totalorder %s61, %s63
      %p67 = scmp.eq.s32.totalorder %s27, 0
      %p68 = por %p66, %p67
      %p69 = scmp.ne.s32.totalorder %s61, %s63
      %p70 = scmp.eq.s32.totalorder %s32, 1
      %p71 = por %p69, %p70
      %p72 = scmp.ne.s32.totalorder %s63, %s64
      %p73 = scmp.eq.s32.totalorder %s32, 0
      %p74 = por %p72, %p73
      %p75 = scmp.ne.s32.totalorder %s63, %s64
      %p76 = scmp.eq.s32.totalorder %s33, 1
      %p77 = por %p75, %p76
      %p79 = scmp.ne.s32.totalorder %s64, %s78
      %p80 = scmp.eq.s32.totalorder %s33, 0
      %p81 = por %p79, %p80
      %s83 = sadd.s32 %s82, 1
      %p86 = scmp.eq.s32.totalorder %s27, 1
      %p87 = scmp.ne.s32.totalorder %s82, %s84
      %p88 = scmp.eq.s32.totalorder %s27, 0
      %p89 = por %p87, %p88
      %p90 = scmp.ne.s32.totalorder %s82, %s84
      %p91 = scmp.eq.s32.totalorder %s32, 1
      %p92 = por %p90, %p91
      %p93 = scmp.ne.s32.totalorder %s84, %s85
      %p94 = scmp.eq.s32.totalorder %s32, 0
      %p95 = por %p93, %p94
      %p96 = scmp.ne.s32.totalorder %s84, %s85
      %p97 = scmp.eq.s32.totalorder %s33, 1
      %p98 = por %p96, %p97
      %p100 = scmp.ne.s32.totalorder %s85, %s99
      %p101 = scmp.eq.s32.totalorder %s33, 0
      %p102 = por %p100, %p101
      %s103 = ssub.s32 %s27, %s34
      %p104 = scmp.eq.s32.totalorder %s103, 0
      %s106 = sadd.s32 %s105, 1
      %s107 = scalar_select %p104, %s105, %s106
      %p110 = pneg %p104
      %p111 = scmp.eq.s32.totalorder %s27, 1
      %p112 = por %p110, %p111
      %p113 = scmp.ne.s32.totalorder %s105, %s108
      %p114 = scmp.eq.s32.totalorder %s27, 0
      %p115 = por %p113, %p114
      %p116 = scmp.ne.s32.totalorder %s105, %s108
      %p117 = scmp.eq.s32.totalorder %s32, 1
      %p118 = por %p116, %p117
      %p119 = scmp.ne.s32.totalorder %s108, %s109
      %p120 = scmp.eq.s32.totalorder %s32, 0
      %p121 = por %p119, %p120
      %p122 = scmp.ne.s32.totalorder %s108, %s109
      %p123 = scmp.eq.s32.totalorder %s33, 1
      %p124 = por %p122, %p123
      %p126 = scmp.ne.s32.totalorder %s109, %s125
      %p127 = scmp.eq.s32.totalorder %s33, 0
      %p128 = por %p126, %p127
      %s129 = ssub.s32 %s27, %s34
      %p130 = scmp.eq.s32.totalorder %s129, 0
      %s132 = sadd.s32 %s131, 1
      %s133 = scalar_select %p130, %s131, %s132
      %p136 = pneg %p130
      %p137 = scmp.eq.s32.totalorder %s27, 1
      %p138 = por %p136, %p137
      %p139 = scmp.ne.s32.totalorder %s131, %s134
      %p140 = scmp.eq.s32.totalorder %s27, 0
      %p141 = por %p139, %p140
      %p142 = scmp.ne.s32.totalorder %s131, %s134
      %p143 = scmp.eq.s32.totalorder %s32, 1
      %p144 = por %p142, %p143
      %p145 = scmp.ne.s32.totalorder %s134, %s135
      %p146 = scmp.eq.s32.totalorder %s32, 0
      %p147 = por %p145, %p146
      %p148 = scmp.ne.s32.totalorder %s134, %s135
      %p149 = scmp.eq.s32.totalorder %s33, 1
      %p150 = por %p148, %p149
      %p152 = scmp.ne.s32.totalorder %s135, %s151
      %p153 = scmp.eq.s32.totalorder %s33, 0
      %p154 = por %p152, %p153
      %s155 = ssub.s32 %s27, %s34
      %p156 = scmp.eq.s32.totalorder %s155, 0
      %s158 = sadd.s32 %s157, 1
      %s159 = scalar_select %p156, %s157, %s158
      %p162 = pneg %p156
      %p163 = scmp.eq.s32.totalorder %s27, 1
      %p164 = por %p162, %p163
      %p165 = scmp.ne.s32.totalorder %s157, %s160
      %p166 = scmp.eq.s32.totalorder %s27, 0
      %p167 = por %p165, %p166
      %p168 = scmp.ne.s32.totalorder %s157, %s160
      %p169 = scmp.eq.s32.totalorder %s32, 1
      %p170 = por %p168, %p169
      %p171 = scmp.ne.s32.totalorder %s160, %s161
      %p172 = scmp.eq.s32.totalorder %s32, 0
      %p173 = por %p171, %p172
      %p174 = scmp.ne.s32.totalorder %s160, %s161
      %p175 = scmp.eq.s32.totalorder %s33, 1
      %p176 = por %p174, %p175
      %p178 = scmp.ne.s32.totalorder %s161, %s177
      %p179 = scmp.eq.s32.totalorder %s33, 0
      %p180 = por %p178, %p179
      %s181 = ssub.s32 %s27, %s34
      %p182 = scmp.eq.s32.totalorder %s181, 0
      %s184 = sadd.s32 %s183, 1
      %s185 = scalar_select %p182, %s183, %s184
      %p188 = pneg %p182
      %p189 = scmp.eq.s32.totalorder %s27, 1
      %p190 = por %p188, %p189
      %p191 = scmp.ne.s32.totalorder %s183, %s186
      %p192 = scmp.eq.s32.totalorder %s27, 0
      %p193 = por %p191, %p192
      %p194 = scmp.ne.s32.totalorder %s183, %s186
      %p195 = scmp.eq.s32.totalorder %s32, 1
      %p196 = por %p194, %p195
      %p197 = scmp.ne.s32.totalorder %s186, %s187
      %p198 = scmp.eq.s32.totalorder %s32, 0
      %p199 = por %p197, %p198
      %p200 = scmp.ne.s32.totalorder %s186, %s187
      %p201 = scmp.eq.s32.totalorder %s33, 1
      %p202 = por %p200, %p201
      %p204 = scmp.ne.s32.totalorder %s187, %s203
      %p205 = scmp.eq.s32.totalorder %s33, 0
      %p206 = por %p204, %p205
      %s207 = ssub.s32 %s27, %s34
      %p208 = scmp.eq.s32.totalorder %s207, 0
      %s210 = sadd.s32 %s209, 1
      %s211 = scalar_select %p208, %s209, %s210
      %p214 = pneg %p208
      %p215 = scmp.eq.s32.totalorder %s27, 1
      %p216 = por %p214, %p215
      %p217 = scmp.ne.s32.totalorder %s209, %s212
      %p218 = scmp.eq.s32.totalorder %s27, 0
      %p219 = por %p217, %p218
      %p220 = scmp.ne.s32.totalorder %s209, %s212
      %p221 = scmp.eq.s32.totalorder %s32, 1
      %p222 = por %p220, %p221
      %p223 = scmp.ne.s32.totalorder %s212, %s213
      %p224 = scmp.eq.s32.totalorder %s32, 0
      %p225 = por %p223, %p224
      %p226 = scmp.ne.s32.totalorder %s212, %s213
      %p227 = scmp.eq.s32.totalorder %s33, 1
      %p228 = por %p226, %p227
      %p230 = scmp.ne.s32.totalorder %s213, %s229
      %p231 = scmp.eq.s32.totalorder %s33, 0
      %p232 = por %p230, %p231
      %s233 = ssub.s32 %s27, %s34
      %p234 = scmp.eq.s32.totalorder %s233, 0
      %s236 = sadd.s32 %s235, 1
      %s237 = scalar_select %p234, %s235, %s236
      %p240 = pneg %p234
      %p241 = scmp.eq.s32.totalorder %s27, 1
      %p242 = por %p240, %p241
      %p243 = scmp.ne.s32.totalorder %s235, %s238
      %p244 = scmp.eq.s32.totalorder %s27, 0
      %p245 = por %p243, %p244
      %p246 = scmp.ne.s32.totalorder %s235, %s238
      %p247 = scmp.eq.s32.totalorder %s32, 1
      %p248 = por %p246, %p247
      %p249 = scmp.ne.s32.totalorder %s238, %s239
      %p250 = scmp.eq.s32.totalorder %s32, 0
      %p251 = por %p249, %p250
      %p252 = scmp.ne.s32.totalorder %s238, %s239
      %p253 = scmp.eq.s32.totalorder %s33, 1
      %p254 = por %p252, %p253
      %p256 = scmp.ne.s32.totalorder %s239, %s255
      %p257 = scmp.eq.s32.totalorder %s33, 0
      %p258 = por %p256, %p257
      %p259 = scmp.le.s32.totalorder 1, %s27
      %p260 = scmp.lt.s32.totalorder %s27, 3
      %p261 = pnand %p259, %p260
      %p262 = pneg %p261
      // Predicated region
      $region9: #{tpu_custom_call.1} parent=5 // pred_check
        _
      $region10: #{tpu_custom_call.1} parent=5 // pred_check_branch
        %264 = sbr.rel (%p261) target = $region12
      $region11: #{tpu_custom_call.1} parent=5 // pred_region
        %s265 = ssub.s32 %s27, 1
        // Predicated region
        $region13: #{tpu_custom_call.1} parent=11 // pred_check
          %p266 = pneg %p74
        $region14: #{tpu_custom_call.1} parent=11 // pred_check_branch
          %268 = sbr.rel (%p266) target = $region16
        $region15: #{tpu_custom_call.1} parent=11 // pred_region
          _
        $region16: #{tpu_custom_call.1} parent=11 // pred_fallthru
          _
        // Predicated region
        $region17: #{tpu_custom_call.1} parent=11 // pred_check
          %p269 = pneg %p95
        $region18: #{tpu_custom_call.1} parent=11 // pred_check_branch
          %271 = sbr.rel (%p269) target = $region20
        $region19: #{tpu_custom_call.1} parent=11 // pred_region
          _
        $region20: #{tpu_custom_call.1} parent=11 // pred_fallthru
          _
      $region12: #{tpu_custom_call.1} parent=5 // pred_fallthru
        _
      %p272 = scmp.lt.s32.totalorder %s27, 2
      // Predicated region
      $region21: #{tpu_custom_call.1} parent=5 // pred_check
        %p273 = pneg %p272
      $region22: #{tpu_custom_call.1} parent=5 // pred_check_branch
        %275 = sbr.rel (%p273) target = $region24
      $region23: #{tpu_custom_call.1} parent=5 // pred_region
        // Predicated region
        $region25: #{tpu_custom_call.1} parent=23 // pred_check
          %p276 = pneg %p47
        $region26: #{tpu_custom_call.1} parent=23 // pred_check_branch
          %278 = sbr.rel (%p276) target = $region28
        $region27: #{tpu_custom_call.1} parent=23 // pred_region
          %p279 = scmp.lt.s32.totalorder %s27, 1
          %s280 = scalar_select %p279, %s27, 1
          %s281 = smul.addr %s280, 72
          %s282 = smul.addr %s281, 8
          %s283 = scalar_lea.vmem %s0, %s282
        $region28: #{tpu_custom_call.1} parent=23 // pred_fallthru
          _
      $region24: #{tpu_custom_call.1} parent=5 // pred_fallthru
        _
      %p284 = scmp.le.s32.totalorder 1, %s27
      %p285 = scmp.lt.s32.totalorder %s27, 3
      %p286 = pnand %p284, %p285
      %p287 = pneg %p286
      // Predicated region
      $region29: #{tpu_custom_call.1} parent=5 // pred_check
        _
      $region30: #{tpu_custom_call.1} parent=5 // pred_check_branch
        %289 = sbr.rel (%p286) target = $region32
      $region31: #{tpu_custom_call.1} parent=5 // pred_region
        %s290 = ssub.s32 %s27, 1
        %p291 = scmp.lt.s32.totalorder %s32, 1
        %s292 = scalar_select %p291, %s32, 1
        %s293 = smul.addr %s292, 72
        %s294 = smul.addr %s293, 8
        %s295 = scalar_lea.vmem %s0, %s294
        %p296 = pneg %p53
        %p297 = pneg %p50
        %p298 = pneg %p74
        %p299 = pneg %p71
        %p300 = pneg %p95
        %p301 = pneg %p92
        %p302 = pneg %p121
        %p303 = pneg %p118
        %s304 = sand.u32 %s108, 1
        %s305 = scalar_lea.sflag [#allocation4], %s304
        %s306 = sand.u32 %s108, 1
        %s307 = smul.addr %s306, 64
        %s308 = scalar_lea.vmem [#allocation3], %s307
        %p309 = pneg %p147
        %p310 = pneg %p144
        %s311 = sand.u32 %s32, 1
        %s312 = scalar_lea.sflag [#allocation6], %s311
        %s313 = sand.u32 %s134, 1
        %s314 = scalar_lea.vmem [#allocation5], %s313
        %p315 = pneg %p173
        %p316 = pneg %p170
        %s317 = sand.u32 %s32, 1
        %s318 = scalar_lea.sflag [#allocation6], %s317
        %s319 = sand.u32 %s160, 1
        %s320 = scalar_lea.vmem [#allocation7], %s319
        %p321 = pneg %p199
        %p322 = pneg %p196
        %s323 = sand.u32 %s32, 1
        %s324 = scalar_lea.sflag [#allocation9], %s323
        %s325 = sand.u32 %s186, 1
        %s326 = smul.addr %s325, 64
        %s327 = scalar_lea.vmem [#allocation8], %s326
        %p328 = pneg %p225
        %p329 = pneg %p222
        %s330 = sand.u32 %s32, 1
        %s331 = scalar_lea.sflag [#allocation9], %s330
        %s332 = sand.u32 %s212, 1
        %s333 = scalar_lea.vmem [#allocation10], %s332
        %p334 = pneg %p251
        %p335 = pneg %p248
        %s336 = sand.u32 %s238, 1
        %s337 = scalar_lea.sflag [#allocation12], %s336
        %s338 = sand.u32 %s238, 1
        %s339 = scalar_lea.vmem [#allocation11], %s338
        %p340 = scmp.lt.s32.totalorder %s32, 1
        %s341 = scalar_select %p340, %s32, 1
        %s342 = smul.addr %s341, 72
        %s343 = smul.addr %s342, 8
        %s344 = scalar_lea.vmem %s0, %s343
        %v345 = vld [vmem:[%s344] sm:$0xff]
        %v346 = vld [vmem:[%s344 + $0x8] sm:$0xff]
        %v347 = vld [vmem:[%s344 + $0x10] sm:$0xff]
        %v348 = vld [vmem:[%s344 + $0x18] sm:$0xff]
        %v349 = vld [vmem:[%s344 + $0x40] sm:$0xff]
        %v350 = vld [vmem:[%s344 + $0x48] sm:$0xff]
        %v351 = vld [vmem:[%s344 + $0x50] sm:$0xff]
        %v352 = vld [vmem:[%s344 + $0x58] sm:$0xff]
        %v353 = vld [vmem:[%s344 + $0x80] sm:$0xff]
        %v354 = vld [vmem:[%s344 + $0x88] sm:$0xff]
        %v355 = vld [vmem:[%s344 + $0x90] sm:$0xff]
        %v356 = vld [vmem:[%s344 + $0x98] sm:$0xff]
        %v357 = vld [vmem:[%s344 + $0xc0] sm:$0xff]
        %v358 = vld [vmem:[%s344 + $0xc8] sm:$0xff]
        %v359 = vld [vmem:[%s344 + $0xd0] sm:$0xff]
        %v360 = vld [vmem:[%s344 + $0xd8] sm:$0xff]
        %v361 = vld [vmem:[%s344 + $0x100] sm:$0xff]
        %v362 = vld [vmem:[%s344 + $0x108] sm:$0xff]
        %v363 = vld [vmem:[%s344 + $0x110] sm:$0xff]
        %v364 = vld [vmem:[%s344 + $0x118] sm:$0xff]
        %v365 = vld [vmem:[%s344 + $0x140] sm:$0xff]
        %v366 = vld [vmem:[%s344 + $0x148] sm:$0xff]
        %v367 = vld [vmem:[%s344 + $0x150] sm:$0xff]
        %v368 = vld [vmem:[%s344 + $0x158] sm:$0xff]
        %v369 = vld [vmem:[%s344 + $0x180] sm:$0xff]
        %v370 = vld [vmem:[%s344 + $0x188] sm:$0xff]
        %v371 = vld [vmem:[%s344 + $0x190] sm:$0xff]
        %v372 = vld [vmem:[%s344 + $0x198] sm:$0xff]
        %v373 = vld [vmem:[%s344 + $0x1c0] sm:$0xff]
        %v374 = vld [vmem:[%s344 + $0x1c8] sm:$0xff]
        %v375 = vld [vmem:[%s344 + $0x1d0] sm:$0xff]
        %v376 = vld [vmem:[%s344 + $0x1d8] sm:$0xff]
        %v377 = vld [vmem:[%s1] sm:$0xff]
        %v378 = vld [vmem:[%s1 + $0x8] sm:$0xff]
        %v379 = vld [vmem:[%s1 + $0x10] sm:$0xff]
        %v380 = vld [vmem:[%s1 + $0x18] sm:$0xff]
        %v381 = vld [vmem:[%s1 + $0x20] sm:$0xff]
        %v382 = vld [vmem:[%s1 + $0x28] sm:$0xff]
        %v383 = vld [vmem:[%s1 + $0x30] sm:$0xff]
        %v384 = vld [vmem:[%s1 + $0x38] sm:$0xff]
        %v385 = vld [vmem:[%s1 + $0x40] sm:$0xff]
        %v386 = vld [vmem:[%s1 + $0x48] sm:$0xff]
        %v387 = vld [vmem:[%s1 + $0x50] sm:$0xff]
        %v388 = vld [vmem:[%s1 + $0x58] sm:$0xff]
        %v389 = vld [vmem:[%s1 + $0x60] sm:$0xff]
        %v390 = vld [vmem:[%s1 + $0x68] sm:$0xff]
        %v391 = vld [vmem:[%s1 + $0x70] sm:$0xff]
        %v392 = vld [vmem:[%s1 + $0x78] sm:$0xff]
        %v393 = vld [vmem:[%s1 + $0x80] sm:$0xff]
        %v394 = vld [vmem:[%s1 + $0x88] sm:$0xff]
        %v395 = vld [vmem:[%s1 + $0x90] sm:$0xff]
        %v396 = vld [vmem:[%s1 + $0x98] sm:$0xff]
        %v397 = vld [vmem:[%s1 + $0xa0] sm:$0xff]
        %v398 = vld [vmem:[%s1 + $0xa8] sm:$0xff]
        %v399 = vld [vmem:[%s1 + $0xb0] sm:$0xff]
        %v400 = vld [vmem:[%s1 + $0xb8] sm:$0xff]
        %v401 = vld [vmem:[%s1 + $0xc0] sm:$0xff]
        %v402 = vld [vmem:[%s1 + $0xc8] sm:$0xff]
        %v403 = vld [vmem:[%s1 + $0xd0] sm:$0xff]
        %v404 = vld [vmem:[%s1 + $0xd8] sm:$0xff]
        %v405 = vld [vmem:[%s1 + $0xe0] sm:$0xff]
        %v406 = vld [vmem:[%s1 + $0xe8] sm:$0xff]
        %v407 = vld [vmem:[%s1 + $0xf0] sm:$0xff]
        %v408 = vld [vmem:[%s1 + $0xf8] sm:$0xff]
        %v409 = vld [vmem:[%s1 + $0x100] sm:$0xff]
        %v410 = vld [vmem:[%s1 + $0x108] sm:$0xff]
        %v411 = vld [vmem:[%s1 + $0x110] sm:$0xff]
        %v412 = vld [vmem:[%s1 + $0x118] sm:$0xff]
        %v413 = vld [vmem:[%s1 + $0x120] sm:$0xff]
        %v414 = vld [vmem:[%s1 + $0x128] sm:$0xff]
        %v415 = vld [vmem:[%s1 + $0x130] sm:$0xff]
        %v416 = vld [vmem:[%s1 + $0x138] sm:$0xff]
        %v417 = vld [vmem:[%s1 + $0x140] sm:$0xff]
        %v418 = vld [vmem:[%s1 + $0x148] sm:$0xff]
        %v419 = vld [vmem:[%s1 + $0x150] sm:$0xff]
        %v420 = vld [vmem:[%s1 + $0x158] sm:$0xff]
        %v421 = vld [vmem:[%s1 + $0x160] sm:$0xff]
        %v422 = vld [vmem:[%s1 + $0x168] sm:$0xff]
        %v423 = vld [vmem:[%s1 + $0x170] sm:$0xff]
        %v424 = vld [vmem:[%s1 + $0x178] sm:$0xff]
        %v425 = vld [vmem:[%s1 + $0x180] sm:$0xff]
        %v426 = vld [vmem:[%s1 + $0x188] sm:$0xff]
        %v427 = vld [vmem:[%s1 + $0x190] sm:$0xff]
        %v428 = vld [vmem:[%s1 + $0x198] sm:$0xff]
        %v429 = vld [vmem:[%s1 + $0x1a0] sm:$0xff]
        %v430 = vld [vmem:[%s1 + $0x1a8] sm:$0xff]
        %v431 = vld [vmem:[%s1 + $0x1b0] sm:$0xff]
        %v432 = vld [vmem:[%s1 + $0x1b8] sm:$0xff]
        %v433 = vld [vmem:[%s1 + $0x1c0] sm:$0xff]
        %v434 = vld [vmem:[%s1 + $0x1c8] sm:$0xff]
        %v435 = vld [vmem:[%s1 + $0x1d0] sm:$0xff]
        %v436 = vld [vmem:[%s1 + $0x1d8] sm:$0xff]
        %v437 = vld [vmem:[%s1 + $0x1e0] sm:$0xff]
        %v438 = vld [vmem:[%s1 + $0x1e8] sm:$0xff]
        %v439 = vld [vmem:[%s1 + $0x1f0] sm:$0xff]
        %v440 = vld [vmem:[%s1 + $0x1f8] sm:$0xff]
        %441 = vmatprep.subr.mxu0 0.0
        %442 = vmatpush1.msra.mxu0 %v377
        %443 = vmatprep.subr.mxu0 0.0
        %444 = vmatpush1.msra.mxu0 %v378
        %445 = vmatprep.subr.mxu0 0.0
        %446 = vmatpush1.msra.mxu0 %v379
        %447 = vmatprep.subr.mxu0 0.0
        %448 = vmatpush1.msra.mxu0 %v380
        %449 = vmatprep.subr.mxu0 0.0
        %450 = vmatpush1.msra.mxu0 %v381
        %451 = vmatprep.subr.mxu0 0.0
        %452 = vmatpush1.msra.mxu0 %v382
        %453 = vmatprep.subr.mxu0 0.0
        %454 = vmatpush1.msra.mxu0 %v383
        %455 = vmatprep.subr.mxu0 0.0
        %456 = vmatpush1.msra.mxu0 %v384
        %457 = vmatprep.subr.mxu0 0.0
        %458 = vmatpush1.msra.mxu0 %v385
        %459 = vmatprep.subr.mxu0 0.0
        %460 = vmatpush1.msra.mxu0 %v386
        %461 = vmatprep.subr.mxu0 0.0
        %462 = vmatpush1.msra.mxu0 %v387
        %463 = vmatprep.subr.mxu0 0.0
        %464 = vmatpush1.msra.mxu0 %v388
        %465 = vmatprep.subr.mxu0 0.0
        %466 = vmatpush1.msra.mxu0 %v389
        %467 = vmatprep.subr.mxu0 0.0
        %468 = vmatpush1.msra.mxu0 %v390
        %469 = vmatprep.subr.mxu0 0.0
        %470 = vmatpush1.msra.mxu0 %v391
        %471 = vmatprep.subr.mxu0 0.0
        %472 = vmatpush1.msra.mxu0 %v392
        %473 = vmatprep.subr.mxu0 0.0
        %474 = vmatpush1.msra.mxu0 %v393
        %475 = vmatprep.subr.mxu0 0.0
        %476 = vmatpush1.msra.mxu0 %v394
        %477 = vmatprep.subr.mxu0 0.0
        %478 = vmatpush1.msra.mxu0 %v395
        %479 = vmatprep.subr.mxu0 0.0
        %480 = vmatpush1.msra.mxu0 %v396
        %481 = vmatprep.subr.mxu0 0.0
        %482 = vmatpush1.msra.mxu0 %v397
        %483 = vmatprep.subr.mxu0 0.0
        %484 = vmatpush1.msra.mxu0 %v398
        %485 = vmatprep.subr.mxu0 0.0
        %486 = vmatpush1.msra.mxu0 %v399
        %487 = vmatprep.subr.mxu0 0.0
        %488 = vmatpush1.msra.mxu0 %v400
        %489 = vmatprep.subr.mxu0 0.0
        %490 = vmatpush1.msra.mxu0 %v401
        %491 = vmatprep.subr.mxu0 0.0
        %492 = vmatpush1.msra.mxu0 %v402
        %493 = vmatprep.subr.mxu0 0.0
        %494 = vmatpush1.msra.mxu0 %v403
        %495 = vmatprep.subr.mxu0 0.0
        %496 = vmatpush1.msra.mxu0 %v404
        %497 = vmatprep.subr.mxu0 0.0
        %498 = vmatpush1.msra.mxu0 %v405
        %499 = vmatprep.subr.mxu0 0.0
        %500 = vmatpush1.msra.mxu0 %v406
        %501 = vmatprep.subr.mxu0 0.0
        %502 = vmatpush1.msra.mxu0 %v407
        %503 = vmatprep.subr.mxu0 0.0
        %504 = vmatpush1.msra.mxu0 %v408
        %505 = vmatprep.mubr.f32.mxu0 %v346
        %506 = vmatmul.mubr.f32.gmra.mrb[0].mxu0 %v345
        %v507 = vpop.f32.mrb[0].mxu0
        %v508 = vadd.f32 0.0, %v507
        %v509 = vpop.f32.mrb[0].mxu0
        %510 = vmatprep.mubr.f32.mxu0 %v350
        %511 = vmatmul.mubr.f32.gmra.mrb[0].mxu0 %v349
        %v512 = vpop.f32.mrb[0].mxu0
        %v513 = vadd.f32 0.0, %v512
        %v514 = vpop.f32.mrb[0].mxu0
        %515 = vmatprep.mubr.f32.mxu0 %v354
        %516 = vmatmul.mubr.f32.gmra.mrb[0].mxu0 %v353
        %v517 = vpop.f32.mrb[0].mxu0
        %v518 = vadd.f32 0.0, %v517
        %v519 = vpop.f32.mrb[0].mxu0
        %520 = vmatprep.mubr.f32.mxu0 %v358
        %521 = vmatmul.mubr.f32.gmra.mrb[0].mxu0 %v357
        %v522 = vpop.f32.mrb[0].mxu0
        %v523 = vadd.f32 0.0, %v522
        %v524 = vpop.f32.mrb[0].mxu0
        %525 = vmatprep.mubr.f32.mxu0 %v362
        %526 = vmatmul.mubr.f32.gmra.mrb[0].mxu0 %v361
        %v527 = vpop.f32.mrb[0].mxu0
        %v528 = vadd.f32 0.0, %v527
        %v529 = vpop.f32.mrb[0].mxu0
        %530 = vmatprep.mubr.f32.mxu0 %v366
        %531 = vmatmul.mubr.f32.gmra.mrb[0].mxu0 %v365
        %v532 = vpop.f32.mrb[0].mxu0
        %v533 = vadd.f32 0.0, %v532
        %v534 = vpop.f32.mrb[0].mxu0
        %535 = vmatprep.mubr.f32.mxu0 %v370
        %536 = vmatmul.mubr.f32.gmra.mrb[0].mxu0 %v369
        %v537 = vpop.f32.mrb[0].mxu0
        %v538 = vadd.f32 0.0, %v537
        %v539 = vpop.f32.mrb[0].mxu0
        %540 = vmatprep.mubr.f32.mxu0 %v374
        %541 = vmatmul.mubr.f32.gmra.mrb[0].mxu0 %v373
        %v542 = vpop.f32.mrb[0].mxu0
        %v543 = vadd.f32 0.0, %v542
        %v544 = vpop.f32.mrb[0].mxu0
        %545 = vdwg.mxu0
        %546 = vmatprep.subr.mxu0 0.0
        %547 = vmatpush1.msra.mxu0 %v409
        %548 = vmatprep.subr.mxu0 0.0
        %549 = vmatpush1.msra.mxu0 %v410
        %550 = vmatprep.subr.mxu0 0.0
        %551 = vmatpush1.msra.mxu0 %v411
        %552 = vmatprep.subr.mxu0 0.0
        %553 = vmatpush1.msra.mxu0 %v412
        %554 = vmatprep.subr.mxu0 0.0
        %555 = vmatpush1.msra.mxu0 %v413
        %556 = vmatprep.subr.mxu0 0.0
        %557 = vmatpush1.msra.mxu0 %v414
        %558 = vmatprep.subr.mxu0 0.0
        %559 = vmatpush1.msra.mxu0 %v415
        %560 = vmatprep.subr.mxu0 0.0
        %561 = vmatpush1.msra.mxu0 %v416
        %562 = vmatprep.subr.mxu0 0.0
        %563 = vmatpush1.msra.mxu0 %v417
        %564 = vmatprep.subr.mxu0 0.0
        %565 = vmatpush1.msra.mxu0 %v418
        %566 = vmatprep.subr.mxu0 0.0
        %567 = vmatpush1.msra.mxu0 %v419
        %568 = vmatprep.subr.mxu0 0.0
        %569 = vmatpush1.msra.mxu0 %v420
        %570 = vmatprep.subr.mxu0 0.0
        %571 = vmatpush1.msra.mxu0 %v421
        %572 = vmatprep.subr.mxu0 0.0
        %573 = vmatpush1.msra.mxu0 %v422
        %574 = vmatprep.subr.mxu0 0.0
        %575 = vmatpush1.msra.mxu0 %v423
        %576 = vmatprep.subr.mxu0 0.0
        %577 = vmatpush1.msra.mxu0 %v424
        %578 = vmatprep.subr.mxu0 0.0
        %579 = vmatpush1.msra.mxu0 %v425
        %580 = vmatprep.subr.mxu0 0.0
        %581 = vmatpush1.msra.mxu0 %v426
        %582 = vmatprep.subr.mxu0 0.0
        %583 = vmatpush1.msra.mxu0 %v427
        %584 = vmatprep.subr.mxu0 0.0
        %585 = vmatpush1.msra.mxu0 %v428
        %586 = vmatprep.subr.mxu0 0.0
        %587 = vmatpush1.msra.mxu0 %v429
        %588 = vmatprep.subr.mxu0 0.0
        %589 = vmatpush1.msra.mxu0 %v430
        %590 = vmatprep.subr.mxu0 0.0
        %591 = vmatpush1.msra.mxu0 %v431
        %592 = vmatprep.subr.mxu0 0.0
        %593 = vmatpush1.msra.mxu0 %v432
        %594 = vmatprep.subr.mxu0 0.0
        %595 = vmatpush1.msra.mxu0 %v433
        %596 = vmatprep.subr.mxu0 0.0
        %597 = vmatpush1.msra.mxu0 %v434
        %598 = vmatprep.subr.mxu0 0.0
        %599 = vmatpush1.msra.mxu0 %v435
        %600 = vmatprep.subr.mxu0 0.0
        %601 = vmatpush1.msra.mxu0 %v436
        %602 = vmatprep.subr.mxu0 0.0
        %603 = vmatpush1.msra.mxu0 %v437
        %604 = vmatprep.subr.mxu0 0.0
        %605 = vmatpush1.msra.mxu0 %v438
        %606 = vmatprep.subr.mxu0 0.0
        %607 = vmatpush1.msra.mxu0 %v439
        %608 = vmatprep.subr.mxu0 0.0
        %609 = vmatpush1.msra.mxu0 %v440
        %610 = vmatprep.mubr.f32.mxu0 %v348
        %611 = vmatmul.mubr.f32.gmra.mrb[0].mxu0 %v347
        %v612 = vpop.f32.mrb[0].mxu0
        %v613 = vadd.f32 %v508, %v612
        %v614 = vpop.f32.mrb[0].mxu0
        %615 = vmatprep.mubr.f32.mxu0 %v352
        %616 = vmatmul.mubr.f32.gmra.mrb[0].mxu0 %v351
        %v617 = vpop.f32.mrb[0].mxu0
        %v618 = vadd.f32 %v513, %v617
        %v619 = vpop.f32.mrb[0].mxu0
        %620 = vmatprep.mubr.f32.mxu0 %v356
        %621 = vmatmul.mubr.f32.gmra.mrb[0].mxu0 %v355
        %v622 = vpop.f32.mrb[0].mxu0
        %v623 = vadd.f32 %v518, %v622
        %v624 = vpop.f32.mrb[0].mxu0
        %625 = vmatprep.mubr.f32.mxu0 %v360
        %626 = vmatmul.mubr.f32.gmra.mrb[0].mxu0 %v359
        %v627 = vpop.f32.mrb[0].mxu0
        %v628 = vadd.f32 %v523, %v627
        %v629 = vpop.f32.mrb[0].mxu0
        %630 = vmatprep.mubr.f32.mxu0 %v364
        %631 = vmatmul.mubr.f32.gmra.mrb[0].mxu0 %v363
        %v632 = vpop.f32.mrb[0].mxu0
        %v633 = vadd.f32 %v528, %v632
        %v634 = vpop.f32.mrb[0].mxu0
        %635 = vmatprep.mubr.f32.mxu0 %v368
        %636 = vmatmul.mubr.f32.gmra.mrb[0].mxu0 %v367
        %v637 = vpop.f32.mrb[0].mxu0
        %v638 = vadd.f32 %v533, %v637
        %v639 = vpop.f32.mrb[0].mxu0
        %640 = vmatprep.mubr.f32.mxu0 %v372
        %641 = vmatmul.mubr.f32.gmra.mrb[0].mxu0 %v371
        %v642 = vpop.f32.mrb[0].mxu0
        %v643 = vadd.f32 %v538, %v642
        %v644 = vpop.f32.mrb[0].mxu0
        %645 = vmatprep.mubr.f32.mxu0 %v376
        %646 = vmatmul.mubr.f32.gmra.mrb[0].mxu0 %v375
        %v647 = vpop.f32.mrb[0].mxu0
        %v648 = vadd.f32 %v543, %v647
        %v649 = vpop.f32.mrb[0].mxu0
        %650 = vdwg.mxu0
        %651 = vst [vmem:[#allocation2] sm:$0xff] %v613
        %652 = vst [vmem:[#allocation2 + $0x8] sm:$0xff] %v618
        %653 = vst [vmem:[#allocation2 + $0x10] sm:$0xff] %v623
        %654 = vst [vmem:[#allocation2 + $0x18] sm:$0xff] %v628
        %655 = vst [vmem:[#allocation2 + $0x20] sm:$0xff] %v633
        %656 = vst [vmem:[#allocation2 + $0x28] sm:$0xff] %v638
        %657 = vst [vmem:[#allocation2 + $0x30] sm:$0xff] %v643
        %658 = vst [vmem:[#allocation2 + $0x38] sm:$0xff] %v648
        %v659 = vld [vmem:[%s344] sm:$0xfe]
        %v660 = vld [vmem:[%s344 + $0x20] sm:$0x1]
        %v661 = vld [vmem:[%s344 + $0x40] sm:$0xfe]
        %v662 = vld [vmem:[%s344 + $0x60] sm:$0x1]
        %v663 = vld [vmem:[%s344 + $0x80] sm:$0xfe]
        %v664 = vld [vmem:[%s344 + $0xa0] sm:$0x1]
        %v665 = vld [vmem:[%s344 + $0xc0] sm:$0xfe]
        %v666 = vld [vmem:[%s344 + $0xe0] sm:$0x1]
        %v667 = vld [vmem:[%s344 + $0x100] sm:$0xfe]
        %v668 = vld [vmem:[%s344 + $0x120] sm:$0x1]
        %v669 = vld [vmem:[%s344 + $0x140] sm:$0xfe]
        %v670 = vld [vmem:[%s344 + $0x160] sm:$0x1]
        %v671 = vld [vmem:[%s344 + $0x180] sm:$0xfe]
        %v672 = vld [vmem:[%s344 + $0x1a0] sm:$0x1]
        %v673 = vld [vmem:[%s344 + $0x1c0] sm:$0xfe]
        %v674 = vld [vmem:[%s344 + $0x1e0] sm:$0x1]
        %vm691 = vcmask 1046528
        %v692 = vrot.slane %v659, 1
        %v693 = vrot.slane %v660, 1
        %v694 = vsel %vm691, %v692, %v693
        %v695 = vrot.slane %v661, 1
        %v696 = vrot.slane %v662, 1
        %v697 = vsel %vm691, %v695, %v696
        %v698 = vrot.slane %v663, 1
        %v699 = vrot.slane %v664, 1
        %v700 = vsel %vm691, %v698, %v699
        %v701 = vrot.slane %v665, 1
        %v702 = vrot.slane %v666, 1
        %v703 = vsel %vm691, %v701, %v702
        %v704 = vrot.slane %v667, 1
        %v705 = vrot.slane %v668, 1
        %v706 = vsel %vm691, %v704, %v705
        %v707 = vrot.slane %v669, 1
        %v708 = vrot.slane %v670, 1
        %v709 = vsel %vm691, %v707, %v708
        %v710 = vrot.slane %v671, 1
        %v711 = vrot.slane %v672, 1
        %v712 = vsel %vm691, %v710, %v711
        %v713 = vrot.slane %v673, 1
        %v714 = vrot.slane %v674, 1
        %v715 = vsel %vm691, %v713, %v714
        %v724 = vld [vmem:[%s1 + $0x200] sm:$0xff]
        %v725 = vld [vmem:[%s1 + $0x208] sm:$0xff]
        %v726 = vld [vmem:[%s1 + $0x210] sm:$0xff]
        %v727 = vld [vmem:[%s1 + $0x218] sm:$0xff]
        %v728 = vld [vmem:[%s1 + $0x220] sm:$0xff]
        %v729 = vld [vmem:[%s1 + $0x228] sm:$0xff]
        %v730 = vld [vmem:[%s1 + $0x230] sm:$0xff]
        %v731 = vld [vmem:[%s1 + $0x238] sm:$0xff]
        %v732 = vld [vmem:[%s1 + $0x240] sm:$0xff]
        %v733 = vld [vmem:[%s1 + $0x248] sm:$0xff]
        %v734 = vld [vmem:[%s1 + $0x250] sm:$0xff]
        %v735 = vld [vmem:[%s1 + $0x258] sm:$0xff]
        %v736 = vld [vmem:[%s1 + $0x260] sm:$0xff]
        %v737 = vld [vmem:[%s1 + $0x268] sm:$0xff]
        %v738 = vld [vmem:[%s1 + $0x270] sm:$0xff]
        %v739 = vld [vmem:[%s1 + $0x278] sm:$0xff]
        %740 = vmatprep.subr.mxu0 0.0
        %741 = vmatpush1.msra.mxu0 %v724
        %742 = vmatprep.subr.mxu0 0.0
        %743 = vmatpush1.msra.mxu0 %v725
        %744 = vmatprep.subr.mxu0 0.0
        %745 = vmatpush1.msra.mxu0 %v726
        %746 = vmatprep.subr.mxu0 0.0
        %747 = vmatpush1.msra.mxu0 %v727
        %748 = vmatprep.subr.mxu0 0.0
        %749 = vmatpush1.msra.mxu0 %v728
        %750 = vmatprep.subr.mxu0 0.0
        %751 = vmatpush1.msra.mxu0 %v729
        %752 = vmatprep.subr.mxu0 0.0
        %753 = vmatpush1.msra.mxu0 %v730
        %754 = vmatprep.subr.mxu0 0.0
        %755 = vmatpush1.msra.mxu0 %v731
        %756 = vmatprep.subr.mxu0 0.0
        %757 = vmatpush1.msra.mxu0 %v732
        %758 = vmatprep.subr.mxu0 0.0
        %759 = vmatpush1.msra.mxu0 %v733
        %760 = vmatprep.subr.mxu0 0.0
        %761 = vmatpush1.msra.mxu0 %v734
        %762 = vmatprep.subr.mxu0 0.0
        %763 = vmatpush1.msra.mxu0 %v735
        %764 = vmatprep.subr.mxu0 0.0
        %765 = vmatpush1.msra.mxu0 %v736
        %766 = vmatprep.subr.mxu0 0.0
        %767 = vmatpush1.msra.mxu0 %v737
        %768 = vmatprep.subr.mxu0 0.0
        %769 = vmatpush1.msra.mxu0 %v738
        %770 = vmatprep.subr.mxu0 0.0
        %771 = vmatpush1.msra.mxu0 %v739
        %772 = vmatprep.subr.mxu0 0.0
        %773 = vmatpush1.msra.mxu0 0.0
        %774 = vmatprep.subr.mxu0 0.0
        %775 = vmatpush1.msra.mxu0 0.0
        %776 = vmatprep.subr.mxu0 0.0
        %777 = vmatpush1.msra.mxu0 0.0
        %778 = vmatprep.subr.mxu0 0.0
        %779 = vmatpush1.msra.mxu0 0.0
        %780 = vmatprep.subr.mxu0 0.0
        %781 = vmatpush1.msra.mxu0 0.0
        %782 = vmatprep.subr.mxu0 0.0
        %783 = vmatpush1.msra.mxu0 0.0
        %784 = vmatprep.subr.mxu0 0.0
        %785 = vmatpush1.msra.mxu0 0.0
        %786 = vmatprep.subr.mxu0 0.0
        %787 = vmatpush1.msra.mxu0 0.0
        %788 = vmatprep.subr.mxu0 0.0
        %789 = vmatpush1.msra.mxu0 0.0
        %790 = vmatprep.subr.mxu0 0.0
        %791 = vmatpush1.msra.mxu0 0.0
        %792 = vmatprep.subr.mxu0 0.0
        %793 = vmatpush1.msra.mxu0 0.0
        %794 = vmatprep.subr.mxu0 0.0
        %795 = vmatpush1.msra.mxu0 0.0
        %796 = vmatprep.subr.mxu0 0.0
        %797 = vmatpush1.msra.mxu0 0.0
        %798 = vmatprep.subr.mxu0 0.0
        %799 = vmatpush1.msra.mxu0 0.0
        %800 = vmatprep.subr.mxu0 0.0
        %801 = vmatpush1.msra.mxu0 0.0
        %802 = vmatprep.subr.mxu0 0.0
        %803 = vmatpush1.msra.mxu0 0.0
        %804 = vmatprep.mubr.f32.mxu0 0.0
        %805 = vmatmul.mubr.f32.gmra.mrb[0].mxu0 %v694
        %v806 = vpop.f32.mrb[0].mxu0
        %v807 = vadd.f32 0.0, %v806
        %v808 = vpop.f32.mrb[0].mxu0
        %809 = vmatprep.mubr.f32.mxu0 0.0
        %810 = vmatmul.mubr.f32.gmra.mrb[0].mxu0 %v697
        %v811 = vpop.f32.mrb[0].mxu0
        %v812 = vadd.f32 0.0, %v811
        %v813 = vpop.f32.mrb[0].mxu0
        %814 = vmatprep.mubr.f32.mxu0 0.0
        %815 = vmatmul.mubr.f32.gmra.mrb[0].mxu0 %v700
        %v816 = vpop.f32.mrb[0].mxu0
        %v817 = vadd.f32 0.0, %v816
        %v818 = vpop.f32.mrb[0].mxu0
        %819 = vmatprep.mubr.f32.mxu0 0.0
        %820 = vmatmul.mubr.f32.gmra.mrb[0].mxu0 %v703
        %v821 = vpop.f32.mrb[0].mxu0
        %v822 = vadd.f32 0.0, %v821
        %v823 = vpop.f32.mrb[0].mxu0
        %824 = vmatprep.mubr.f32.mxu0 0.0
        %825 = vmatmul.mubr.f32.gmra.mrb[0].mxu0 %v706
        %v826 = vpop.f32.mrb[0].mxu0
        %v827 = vadd.f32 0.0, %v826
        %v828 = vpop.f32.mrb[0].mxu0
        %829 = vmatprep.mubr.f32.mxu0 0.0
        %830 = vmatmul.mubr.f32.gmra.mrb[0].mxu0 %v709
        %v831 = vpop.f32.mrb[0].mxu0
        %v832 = vadd.f32 0.0, %v831
        %v833 = vpop.f32.mrb[0].mxu0
        %834 = vmatprep.mubr.f32.mxu0 0.0
        %835 = vmatmul.mubr.f32.gmra.mrb[0].mxu0 %v712
        %v836 = vpop.f32.mrb[0].mxu0
        %v837 = vadd.f32 0.0, %v836
        %v838 = vpop.f32.mrb[0].mxu0
        %839 = vmatprep.mubr.f32.mxu0 0.0
        %840 = vmatmul.mubr.f32.gmra.mrb[0].mxu0 %v715
        %v841 = vpop.f32.mrb[0].mxu0
        %v842 = vadd.f32 0.0, %v841
        %v843 = vpop.f32.mrb[0].mxu0
        %844 = vdwg.mxu0
        %v845 = vld [vmem:[#allocation2] sm:$0xff]
        %v846 = vld [vmem:[#allocation2 + $0x8] sm:$0xff]
        %v847 = vld [vmem:[#allocation2 + $0x10] sm:$0xff]
        %v848 = vld [vmem:[#allocation2 + $0x18] sm:$0xff]
        %v849 = vld [vmem:[#allocation2 + $0x20] sm:$0xff]
        %v850 = vld [vmem:[#allocation2 + $0x28] sm:$0xff]
        %v851 = vld [vmem:[#allocation2 + $0x30] sm:$0xff]
        %v852 = vld [vmem:[#allocation2 + $0x38] sm:$0xff]
        %v853 = vadd.f32 %v845, %v807
        %v854 = vadd.f32 %v846, %v812
        %v855 = vadd.f32 %v847, %v817
        %v856 = vadd.f32 %v848, %v822
        %v857 = vadd.f32 %v849, %v827
        %v858 = vadd.f32 %v850, %v832
        %v859 = vadd.f32 %v851, %v837
        %v860 = vadd.f32 %v852, %v842
        %861 = vst [vmem:[#allocation2] sm:$0xff] %v853
        %862 = vst [vmem:[#allocation2 + $0x8] sm:$0xff] %v854
        %863 = vst [vmem:[#allocation2 + $0x10] sm:$0xff] %v855
        %864 = vst [vmem:[#allocation2 + $0x18] sm:$0xff] %v856
        %865 = vst [vmem:[#allocation2 + $0x20] sm:$0xff] %v857
        %866 = vst [vmem:[#allocation2 + $0x28] sm:$0xff] %v858
        %867 = vst [vmem:[#allocation2 + $0x30] sm:$0xff] %v859
        %868 = vst [vmem:[#allocation2 + $0x38] sm:$0xff] %v860
        %v869 = vld [vmem:[%s344 + $0x10] sm:$0xfe]
        %v870 = vld [vmem:[%s344 + $0x30] sm:$0x1]
        %v871 = vld [vmem:[%s344 + $0x50] sm:$0xfe]
        %v872 = vld [vmem:[%s344 + $0x70] sm:$0x1]
        %v873 = vld [vmem:[%s344 + $0x90] sm:$0xfe]
        %v874 = vld [vmem:[%s344 + $0xb0] sm:$0x1]
        %v875 = vld [vmem:[%s344 + $0xd0] sm:$0xfe]
        %v876 = vld [vmem:[%s344 + $0xf0] sm:$0x1]
        %v877 = vld [vmem:[%s344 + $0x110] sm:$0xfe]
        %v878 = vld [vmem:[%s344 + $0x130] sm:$0x1]
        %v879 = vld [vmem:[%s344 + $0x150] sm:$0xfe]
        %v880 = vld [vmem:[%s344 + $0x170] sm:$0x1]
        %v881 = vld [vmem:[%s344 + $0x190] sm:$0xfe]
        %v882 = vld [vmem:[%s344 + $0x1b0] sm:$0x1]
        %v883 = vld [vmem:[%s344 + $0x1d0] sm:$0xfe]
        %v884 = vld [vmem:[%s344 + $0x1f0] sm:$0x1]
        %v901 = vrot.slane %v869, 1
        %v902 = vrot.slane %v870, 1
        %v903 = vsel %vm691, %v901, %v902
        %v904 = vrot.slane %v871, 1
        %v905 = vrot.slane %v872, 1
        %v906 = vsel %vm691, %v904, %v905
        %v907 = vrot.slane %v873, 1
        %v908 = vrot.slane %v874, 1
        %v909 = vsel %vm691, %v907, %v908
        %v910 = vrot.slane %v875, 1
        %v911 = vrot.slane %v876, 1
        %v912 = vsel %vm691, %v910, %v911
        %v913 = vrot.slane %v877, 1
        %v914 = vrot.slane %v878, 1
        %v915 = vsel %vm691, %v913, %v914
        %v916 = vrot.slane %v879, 1
        %v917 = vrot.slane %v880, 1
        %v918 = vsel %vm691, %v916, %v917
        %v919 = vrot.slane %v881, 1
        %v920 = vrot.slane %v882, 1
        %v921 = vsel %vm691, %v919, %v920
        %v922 = vrot.slane %v883, 1
        %v923 = vrot.slane %v884, 1
        %v924 = vsel %vm691, %v922, %v923
        %v933 = vld [vmem:[%s1 + $0x280] sm:$0xff]
        %v934 = vld [vmem:[%s1 + $0x288] sm:$0xff]
        %v935 = vld [vmem:[%s1 + $0x290] sm:$0xff]
        %v936 = vld [vmem:[%s1 + $0x298] sm:$0xff]
        %v937 = vld [vmem:[%s1 + $0x2a0] sm:$0xff]
        %v938 = vld [vmem:[%s1 + $0x2a8] sm:$0xff]
        %v939 = vld [vmem:[%s1 + $0x2b0] sm:$0xff]
        %v940 = vld [vmem:[%s1 + $0x2b8] sm:$0xff]
        %v941 = vld [vmem:[%s1 + $0x2c0] sm:$0xff]
        %v942 = vld [vmem:[%s1 + $0x2c8] sm:$0xff]
        %v943 = vld [vmem:[%s1 + $0x2d0] sm:$0xff]
        %v944 = vld [vmem:[%s1 + $0x2d8] sm:$0xff]
        %v945 = vld [vmem:[%s1 + $0x2e0] sm:$0xff]
        %v946 = vld [vmem:[%s1 + $0x2e8] sm:$0xff]
        %v947 = vld [vmem:[%s1 + $0x2f0] sm:$0xff]
        %v948 = vld [vmem:[%s1 + $0x2f8] sm:$0xff]
        %949 = vmatprep.subr.mxu0 0.0
        %950 = vmatpush1.msra.mxu0 %v933
        %951 = vmatprep.subr.mxu0 0.0
        %952 = vmatpush1.msra.mxu0 %v934
        %953 = vmatprep.subr.mxu0 0.0
        %954 = vmatpush1.msra.mxu0 %v935
        %955 = vmatprep.subr.mxu0 0.0
        %956 = vmatpush1.msra.mxu0 %v936
        %957 = vmatprep.subr.mxu0 0.0
        %958 = vmatpush1.msra.mxu0 %v937
        %959 = vmatprep.subr.mxu0 0.0
        %960 = vmatpush1.msra.mxu0 %v938
        %961 = vmatprep.subr.mxu0 0.0
        %962 = vmatpush1.msra.mxu0 %v939
        %963 = vmatprep.subr.mxu0 0.0
        %964 = vmatpush1.msra.mxu0 %v940
        %965 = vmatprep.subr.mxu0 0.0
        %966 = vmatpush1.msra.mxu0 %v941
        %967 = vmatprep.subr.mxu0 0.0
        %968 = vmatpush1.msra.mxu0 %v942
        %969 = vmatprep.subr.mxu0 0.0
        %970 = vmatpush1.msra.mxu0 %v943
        %971 = vmatprep.subr.mxu0 0.0
        %972 = vmatpush1.msra.mxu0 %v944
        %973 = vmatprep.subr.mxu0 0.0
        %974 = vmatpush1.msra.mxu0 %v945
        %975 = vmatprep.subr.mxu0 0.0
        %976 = vmatpush1.msra.mxu0 %v946
        %977 = vmatprep.subr.mxu0 0.0
        %978 = vmatpush1.msra.mxu0 %v947
        %979 = vmatprep.subr.mxu0 0.0
        %980 = vmatpush1.msra.mxu0 %v948
        %981 = vmatprep.subr.mxu0 0.0
        %982 = vmatpush1.msra.mxu0 0.0
        %983 = vmatprep.subr.mxu0 0.0
        %984 = vmatpush1.msra.mxu0 0.0
        %985 = vmatprep.subr.mxu0 0.0
        %986 = vmatpush1.msra.mxu0 0.0
        %987 = vmatprep.subr.mxu0 0.0
        %988 = vmatpush1.msra.mxu0 0.0
        %989 = vmatprep.subr.mxu0 0.0
        %990 = vmatpush1.msra.mxu0 0.0
        %991 = vmatprep.subr.mxu0 0.0
        %992 = vmatpush1.msra.mxu0 0.0
        %993 = vmatprep.subr.mxu0 0.0
        %994 = vmatpush1.msra.mxu0 0.0
        %995 = vmatprep.subr.mxu0 0.0
        %996 = vmatpush1.msra.mxu0 0.0
        %997 = vmatprep.subr.mxu0 0.0
        %998 = vmatpush1.msra.mxu0 0.0
        %999 = vmatprep.subr.mxu0 0.0
        %1000 = vmatpush1.msra.mxu0 0.0
        %1001 = vmatprep.subr.mxu0 0.0
        %1002 = vmatpush1.msra.mxu0 0.0
        %1003 = vmatprep.subr.mxu0 0.0
        %1004 = vmatpush1.msra.mxu0 0.0
        %1005 = vmatprep.subr.mxu0 0.0
        %1006 = vmatpush1.msra.mxu0 0.0
        %1007 = vmatprep.subr.mxu0 0.0
        %1008 = vmatpush1.msra.mxu0 0.0
        %1009 = vmatprep.subr.mxu0 0.0
        %1010 = vmatpush1.msra.mxu0 0.0
        %1011 = vmatprep.subr.mxu0 0.0
        %1012 = vmatpush1.msra.mxu0 0.0
        %1013 = vmatprep.mubr.f32.mxu0 0.0
        %1014 = vmatmul.mubr.f32.gmra.mrb[0].mxu0 %v903
        %v1015 = vpop.f32.mrb[0].mxu0
        %v1016 = vadd.f32 0.0, %v1015
        %v1017 = vpop.f32.mrb[0].mxu0
        %1018 = vmatprep.mubr.f32.mxu0 0.0
        %1019 = vmatmul.mubr.f32.gmra.mrb[0].mxu0 %v906
        %v1020 = vpop.f32.mrb[0].mxu0
        %v1021 = vadd.f32 0.0, %v1020
        %v1022 = vpop.f32.mrb[0].mxu0
        %1023 = vmatprep.mubr.f32.mxu0 0.0
        %1024 = vmatmul.mubr.f32.gmra.mrb[0].mxu0 %v909
        %v1025 = vpop.f32.mrb[0].mxu0
        %v1026 = vadd.f32 0.0, %v1025
        %v1027 = vpop.f32.mrb[0].mxu0
        %1028 = vmatprep.mubr.f32.mxu0 0.0
        %1029 = vmatmul.mubr.f32.gmra.mrb[0].mxu0 %v912
        %v1030 = vpop.f32.mrb[0].mxu0
        %v1031 = vadd.f32 0.0, %v1030
        %v1032 = vpop.f32.mrb[0].mxu0
        %1033 = vmatprep.mubr.f32.mxu0 0.0
        %1034 = vmatmul.mubr.f32.gmra.mrb[0].mxu0 %v915
        %v1035 = vpop.f32.mrb[0].mxu0
        %v1036 = vadd.f32 0.0, %v1035
        %v1037 = vpop.f32.mrb[0].mxu0
        %1038 = vmatprep.mubr.f32.mxu0 0.0
        %1039 = vmatmul.mubr.f32.gmra.mrb[0].mxu0 %v918
        %v1040 = vpop.f32.mrb[0].mxu0
        %v1041 = vadd.f32 0.0, %v1040
        %v1042 = vpop.f32.mrb[0].mxu0
        %1043 = vmatprep.mubr.f32.mxu0 0.0
        %1044 = vmatmul.mubr.f32.gmra.mrb[0].mxu0 %v921
        %v1045 = vpop.f32.mrb[0].mxu0
        %v1046 = vadd.f32 0.0, %v1045
        %v1047 = vpop.f32.mrb[0].mxu0
        %1048 = vmatprep.mubr.f32.mxu0 0.0
        %1049 = vmatmul.mubr.f32.gmra.mrb[0].mxu0 %v924
        %v1050 = vpop.f32.mrb[0].mxu0
        %v1051 = vadd.f32 0.0, %v1050
        %v1052 = vpop.f32.mrb[0].mxu0
        %1053 = vdwg.mxu0
        %v1054 = vld [vmem:[#allocation2] sm:$0xff]
        %v1055 = vld [vmem:[#allocation2 + $0x8] sm:$0xff]
        %v1056 = vld [vmem:[#allocation2 + $0x10] sm:$0xff]
        %v1057 = vld [vmem:[#allocation2 + $0x18] sm:$0xff]
        %v1058 = vld [vmem:[#allocation2 + $0x20] sm:$0xff]
        %v1059 = vld [vmem:[#allocation2 + $0x28] sm:$0xff]
        %v1060 = vld [vmem:[#allocation2 + $0x30] sm:$0xff]
        %v1061 = vld [vmem:[#allocation2 + $0x38] sm:$0xff]
        %v1062 = vadd.f32 %v1054, %v1016
        %v1063 = vadd.f32 %v1055, %v1021
        %v1064 = vadd.f32 %v1056, %v1026
        %v1065 = vadd.f32 %v1057, %v1031
        %v1066 = vadd.f32 %v1058, %v1036
        %v1067 = vadd.f32 %v1059, %v1041
        %v1068 = vadd.f32 %v1060, %v1046
        %v1069 = vadd.f32 %v1061, %v1051
        %1070 = vst [vmem:[#allocation2] sm:$0xff] %v1062
        %1071 = vst [vmem:[#allocation2 + $0x8] sm:$0xff] %v1063
        %1072 = vst [vmem:[#allocation2 + $0x10] sm:$0xff] %v1064
        %1073 = vst [vmem:[#allocation2 + $0x18] sm:$0xff] %v1065
        %1074 = vst [vmem:[#allocation2 + $0x20] sm:$0xff] %v1066
        %1075 = vst [vmem:[#allocation2 + $0x28] sm:$0xff] %v1067
        %1076 = vst [vmem:[#allocation2 + $0x30] sm:$0xff] %v1068
        %1077 = vst [vmem:[#allocation2 + $0x38] sm:$0xff] %v1069
        %s1078 = scalar_lea.vmem %s344, 64
        %v1079 = vld [vmem:[%s1078] sm:$0xff]
        %v1080 = vld [vmem:[%s1078 + $0x8] sm:$0xff]
        %v1081 = vld [vmem:[%s1078 + $0x40] sm:$0xff]
        %v1082 = vld [vmem:[%s1078 + $0x48] sm:$0xff]
        %v1083 = vld [vmem:[%s1078 + $0x80] sm:$0xff]
        %v1084 = vld [vmem:[%s1078 + $0x88] sm:$0xff]
        %v1085 = vld [vmem:[%s1078 + $0xc0] sm:$0xff]
        %v1086 = vld [vmem:[%s1078 + $0xc8] sm:$0xff]
        %v1087 = vld [vmem:[%s1078 + $0x100] sm:$0xff]
        %v1088 = vld [vmem:[%s1078 + $0x108] sm:$0xff]
        %v1089 = vld [vmem:[%s1078 + $0x140] sm:$0xff]
        %v1090 = vld [vmem:[%s1078 + $0x148] sm:$0xff]
        %v1091 = vld [vmem:[%s1078 + $0x180] sm:$0xff]
        %v1092 = vld [vmem:[%s1078 + $0x188] sm:$0xff]
        %v1093 = vld [vmem:[%s1078 + $0x1c0] sm:$0xff]
        %v1094 = vld [vmem:[%s1078 + $0x1c8] sm:$0xff]
        %v1095 = vld [vmem:[%s1 + $0x300] sm:$0xff]
        %v1096 = vld [vmem:[%s1 + $0x308] sm:$0xff]
        %v1097 = vld [vmem:[%s1 + $0x310] sm:$0xff]
        %v1098 = vld [vmem:[%s1 + $0x318] sm:$0xff]
        %v1099 = vld [vmem:[%s1 + $0x320] sm:$0xff]
        %v1100 = vld [vmem:[%s1 + $0x328] sm:$0xff]
        %v1101 = vld [vmem:[%s1 + $0x330] sm:$0xff]
        %v1102 = vld [vmem:[%s1 + $0x338] sm:$0xff]
        %v1103 = vld [vmem:[%s1 + $0x340] sm:$0xff]
        %v1104 = vld [vmem:[%s1 + $0x348] sm:$0xff]
        %v1105 = vld [vmem:[%s1 + $0x350] sm:$0xff]
        %v1106 = vld [vmem:[%s1 + $0x358] sm:$0xff]
        %v1107 = vld [vmem:[%s1 + $0x360] sm:$0xff]
        %v1108 = vld [vmem:[%s1 + $0x368] sm:$0xff]
        %v1109 = vld [vmem:[%s1 + $0x370] sm:$0xff]
        %v1110 = vld [vmem:[%s1 + $0x378] sm:$0xff]
        %v1111 = vld [vmem:[%s1 + $0x380] sm:$0xff]
        %v1112 = vld [vmem:[%s1 + $0x388] sm:$0xff]
        %v1113 = vld [vmem:[%s1 + $0x390] sm:$0xff]
        %v1114 = vld [vmem:[%s1 + $0x398] sm:$0xff]
        %v1115 = vld [vmem:[%s1 + $0x3a0] sm:$0xff]
        %v1116 = vld [vmem:[%s1 + $0x3a8] sm:$0xff]
        %v1117 = vld [vmem:[%s1 + $0x3b0] sm:$0xff]
        %v1118 = vld [vmem:[%s1 + $0x3b8] sm:$0xff]
        %v1119 = vld [vmem:[%s1 + $0x3c0] sm:$0xff]
        %v1120 = vld [vmem:[%s1 + $0x3c8] sm:$0xff]
        %v1121 = vld [vmem:[%s1 + $0x3d0] sm:$0xff]
        %v1122 = vld [vmem:[%s1 + $0x3d8] sm:$0xff]
        %v1123 = vld [vmem:[%s1 + $0x3e0] sm:$0xff]
        %v1124 = vld [vmem:[%s1 + $0x3e8] sm:$0xff]
        %v1125 = vld [vmem:[%s1 + $0x3f0] sm:$0xff]
        %v1126 = vld [vmem:[%s1 + $0x3f8] sm:$0xff]
        %1127 = vmatprep.subr.mxu0 0.0
        %1128 = vmatpush1.msra.mxu0 %v1095
        %1129 = vmatprep.subr.mxu0 0.0
        %1130 = vmatpush1.msra.mxu0 %v1096
        %1131 = vmatprep.subr.mxu0 0.0
        %1132 = vmatpush1.msra.mxu0 %v1097
        %1133 = vmatprep.subr.mxu0 0.0
        %1134 = vmatpush1.msra.mxu0 %v1098
        %1135 = vmatprep.subr.mxu0 0.0
        %1136 = vmatpush1.msra.mxu0 %v1099
        %1137 = vmatprep.subr.mxu0 0.0
        %1138 = vmatpush1.msra.mxu0 %v1100
        %1139 = vmatprep.subr.mxu0 0.0
        %1140 = vmatpush1.msra.mxu0 %v1101
        %1141 = vmatprep.subr.mxu0 0.0
        %1142 = vmatpush1.msra.mxu0 %v1102
        %1143 = vmatprep.subr.mxu0 0.0
        %1144 = vmatpush1.msra.mxu0 %v1103
        %1145 = vmatprep.subr.mxu0 0.0
        %1146 = vmatpush1.msra.mxu0 %v1104
        %1147 = vmatprep.subr.mxu0 0.0
        %1148 = vmatpush1.msra.mxu0 %v1105
        %1149 = vmatprep.subr.mxu0 0.0
        %1150 = vmatpush1.msra.mxu0 %v1106
        %1151 = vmatprep.subr.mxu0 0.0
        %1152 = vmatpush1.msra.mxu0 %v1107
        %1153 = vmatprep.subr.mxu0 0.0
        %1154 = vmatpush1.msra.mxu0 %v1108
        %1155 = vmatprep.subr.mxu0 0.0
        %1156 = vmatpush1.msra.mxu0 %v1109
        %1157 = vmatprep.subr.mxu0 0.0
        %1158 = vmatpush1.msra.mxu0 %v1110
        %1159 = vmatprep.subr.mxu0 0.0
        %1160 = vmatpush1.msra.mxu0 %v1111
        %1161 = vmatprep.subr.mxu0 0.0
        %1162 = vmatpush1.msra.mxu0 %v1112
        %1163 = vmatprep.subr.mxu0 0.0
        %1164 = vmatpush1.msra.mxu0 %v1113
        %1165 = vmatprep.subr.mxu0 0.0
        %1166 = vmatpush1.msra.mxu0 %v1114
        %1167 = vmatprep.subr.mxu0 0.0
        %1168 = vmatpush1.msra.mxu0 %v1115
        %1169 = vmatprep.subr.mxu0 0.0
        %1170 = vmatpush1.msra.mxu0 %v1116
        %1171 = vmatprep.subr.mxu0 0.0
        %1172 = vmatpush1.msra.mxu0 %v1117
        %1173 = vmatprep.subr.mxu0 0.0
        %1174 = vmatpush1.msra.mxu0 %v1118
        %1175 = vmatprep.subr.mxu0 0.0
        %1176 = vmatpush1.msra.mxu0 %v1119
        %1177 = vmatprep.subr.mxu0 0.0
        %1178 = vmatpush1.msra.mxu0 %v1120
        %1179 = vmatprep.subr.mxu0 0.0
        %1180 = vmatpush1.msra.mxu0 %v1121
        %1181 = vmatprep.subr.mxu0 0.0
        %1182 = vmatpush1.msra.mxu0 %v1122
        %1183 = vmatprep.subr.mxu0 0.0
        %1184 = vmatpush1.msra.mxu0 %v1123
        %1185 = vmatprep.subr.mxu0 0.0
        %1186 = vmatpush1.msra.mxu0 %v1124
        %1187 = vmatprep.subr.mxu0 0.0
        %1188 = vmatpush1.msra.mxu0 %v1125
        %1189 = vmatprep.subr.mxu0 0.0
        %1190 = vmatpush1.msra.mxu0 %v1126
        %1191 = vmatprep.mubr.f32.mxu0 %v1080
        %1192 = vmatmul.mubr.f32.gmra.mrb[0].mxu0 %v1079
        %v1193 = vpop.f32.mrb[0].mxu0
        %v1194 = vadd.f32 0.0, %v1193
        %v1195 = vpop.f32.mrb[0].mxu0
        %1196 = vmatprep.mubr.f32.mxu0 %v1082
        %1197 = vmatmul.mubr.f32.gmra.mrb[0].mxu0 %v1081
        %v1198 = vpop.f32.mrb[0].mxu0
        %v1199 = vadd.f32 0.0, %v1198
        %v1200 = vpop.f32.mrb[0].mxu0
        %1201 = vmatprep.mubr.f32.mxu0 %v1084
        %1202 = vmatmul.mubr.f32.gmra.mrb[0].mxu0 %v1083
        %v1203 = vpop.f32.mrb[0].mxu0
        %v1204 = vadd.f32 0.0, %v1203
        %v1205 = vpop.f32.mrb[0].mxu0
        %1206 = vmatprep.mubr.f32.mxu0 %v1086
        %1207 = vmatmul.mubr.f32.gmra.mrb[0].mxu0 %v1085
        %v1208 = vpop.f32.mrb[0].mxu0
        %v1209 = vadd.f32 0.0, %v1208
        %v1210 = vpop.f32.mrb[0].mxu0
        %1211 = vmatprep.mubr.f32.mxu0 %v1088
        %1212 = vmatmul.mubr.f32.gmra.mrb[0].mxu0 %v1087
        %v1213 = vpop.f32.mrb[0].mxu0
        %v1214 = vadd.f32 0.0, %v1213
        %v1215 = vpop.f32.mrb[0].mxu0
        %1216 = vmatprep.mubr.f32.mxu0 %v1090
        %1217 = vmatmul.mubr.f32.gmra.mrb[0].mxu0 %v1089
        %v1218 = vpop.f32.mrb[0].mxu0
        %v1219 = vadd.f32 0.0, %v1218
        %v1220 = vpop.f32.mrb[0].mxu0
        %1221 = vmatprep.mubr.f32.mxu0 %v1092
        %1222 = vmatmul.mubr.f32.gmra.mrb[0].mxu0 %v1091
        %v1223 = vpop.f32.mrb[0].mxu0
        %v1224 = vadd.f32 0.0, %v1223
        %v1225 = vpop.f32.mrb[0].mxu0
        %1226 = vmatprep.mubr.f32.mxu0 %v1094
        %1227 = vmatmul.mubr.f32.gmra.mrb[0].mxu0 %v1093
        %v1228 = vpop.f32.mrb[0].mxu0
        %v1229 = vadd.f32 0.0, %v1228
        %v1230 = vpop.f32.mrb[0].mxu0
        %1231 = vdwg.mxu0
        %v1232 = vld [vmem:[#allocation2] sm:$0xff]
        %v1233 = vld [vmem:[#allocation2 + $0x8] sm:$0xff]
        %v1234 = vld [vmem:[#allocation2 + $0x10] sm:$0xff]
        %v1235 = vld [vmem:[#allocation2 + $0x18] sm:$0xff]
        %v1236 = vld [vmem:[#allocation2 + $0x20] sm:$0xff]
        %v1237 = vld [vmem:[#allocation2 + $0x28] sm:$0xff]
        %v1238 = vld [vmem:[#allocation2 + $0x30] sm:$0xff]
        %v1239 = vld [vmem:[#allocation2 + $0x38] sm:$0xff]
        %v1240 = vadd.f32 %v1232, %v1194
        %v1241 = vadd.f32 %v1233, %v1199
        %v1242 = vadd.f32 %v1234, %v1204
        %v1243 = vadd.f32 %v1235, %v1209
        %v1244 = vadd.f32 %v1236, %v1214
        %v1245 = vadd.f32 %v1237, %v1219
        %v1246 = vadd.f32 %v1238, %v1224
        %v1247 = vadd.f32 %v1239, %v1229
        %1248 = vst [vmem:[#allocation2] sm:$0xff] %v1240
        %1249 = vst [vmem:[#allocation2 + $0x8] sm:$0xff] %v1241
        %1250 = vst [vmem:[#allocation2 + $0x10] sm:$0xff] %v1242
        %1251 = vst [vmem:[#allocation2 + $0x18] sm:$0xff] %v1243
        %1252 = vst [vmem:[#allocation2 + $0x20] sm:$0xff] %v1244
        %1253 = vst [vmem:[#allocation2 + $0x28] sm:$0xff] %v1245
        %1254 = vst [vmem:[#allocation2 + $0x30] sm:$0xff] %v1246
        %1255 = vst [vmem:[#allocation2 + $0x38] sm:$0xff] %v1247
        %v1256 = vld [vmem:[%s1078] sm:$0xfe]
        %v1257 = vld [vmem:[%s1078 + $0x20] sm:$0x1]
        %v1258 = vld [vmem:[%s1078 + $0x40] sm:$0xfe]
        %v1259 = vld [vmem:[%s1078 + $0x60] sm:$0x1]
        %v1260 = vld [vmem:[%s1078 + $0x80] sm:$0xfe]
        %v1261 = vld [vmem:[%s1078 + $0xa0] sm:$0x1]
        %v1262 = vld [vmem:[%s1078 + $0xc0] sm:$0xfe]
        %v1263 = vld [vmem:[%s1078 + $0xe0] sm:$0x1]
        %v1264 = vld [vmem:[%s1078 + $0x100] sm:$0xfe]
        %v1265 = vld [vmem:[%s1078 + $0x120] sm:$0x1]
        %v1266 = vld [vmem:[%s1078 + $0x140] sm:$0xfe]
        %v1267 = vld [vmem:[%s1078 + $0x160] sm:$0x1]
        %v1268 = vld [vmem:[%s1078 + $0x180] sm:$0xfe]
        %v1269 = vld [vmem:[%s1078 + $0x1a0] sm:$0x1]
        %v1270 = vld [vmem:[%s1078 + $0x1c0] sm:$0xfe]
        %v1271 = vld [vmem:[%s1078 + $0x1e0] sm:$0x1]
        %v1288 = vrot.slane %v1256, 1
        %v1289 = vrot.slane %v1257, 1
        %v1290 = vsel %vm691, %v1288, %v1289
        %v1291 = vrot.slane %v1258, 1
        %v1292 = vrot.slane %v1259, 1
        %v1293 = vsel %vm691, %v1291, %v1292
        %v1294 = vrot.slane %v1260, 1
        %v1295 = vrot.slane %v1261, 1
        %v1296 = vsel %vm691, %v1294, %v1295
        %v1297 = vrot.slane %v1262, 1
        %v1298 = vrot.slane %v1263, 1
        %v1299 = vsel %vm691, %v1297, %v1298
        %v1300 = vrot.slane %v1264, 1
        %v1301 = vrot.slane %v1265, 1
        %v1302 = vsel %vm691, %v1300, %v1301
        %v1303 = vrot.slane %v1266, 1
        %v1304 = vrot.slane %v1267, 1
        %v1305 = vsel %vm691, %v1303, %v1304
        %v1306 = vrot.slane %v1268, 1
        %v1307 = vrot.slane %v1269, 1
        %v1308 = vsel %vm691, %v1306, %v1307
        %v1309 = vrot.slane %v1270, 1
        %v1310 = vrot.slane %v1271, 1
        %v1311 = vsel %vm691, %v1309, %v1310
        %v1320 = vld [vmem:[%s1 + $0x400] sm:$0xff]
        %v1321 = vld [vmem:[%s1 + $0x408] sm:$0xff]
        %v1322 = vld [vmem:[%s1 + $0x410] sm:$0xff]
        %v1323 = vld [vmem:[%s1 + $0x418] sm:$0xff]
        %v1324 = vld [vmem:[%s1 + $0x420] sm:$0xff]
        %v1325 = vld [vmem:[%s1 + $0x428] sm:$0xff]
        %v1326 = vld [vmem:[%s1 + $0x430] sm:$0xff]
        %v1327 = vld [vmem:[%s1 + $0x438] sm:$0xff]
        %v1328 = vld [vmem:[%s1 + $0x440] sm:$0xff]
        %v1329 = vld [vmem:[%s1 + $0x448] sm:$0xff]
        %v1330 = vld [vmem:[%s1 + $0x450] sm:$0xff]
        %v1331 = vld [vmem:[%s1 + $0x458] sm:$0xff]
        %v1332 = vld [vmem:[%s1 + $0x460] sm:$0xff]
        %v1333 = vld [vmem:[%s1 + $0x468] sm:$0xff]
        %v1334 = vld [vmem:[%s1 + $0x470] sm:$0xff]
        %v1335 = vld [vmem:[%s1 + $0x478] sm:$0xff]
        %1336 = vmatprep.subr.mxu0 0.0
        %1337 = vmatpush1.msra.mxu0 %v1320
        %1338 = vmatprep.subr.mxu0 0.0
        %1339 = vmatpush1.msra.mxu0 %v1321
        %1340 = vmatprep.subr.mxu0 0.0
        %1341 = vmatpush1.msra.mxu0 %v1322
        %1342 = vmatprep.subr.mxu0 0.0
        %1343 = vmatpush1.msra.mxu0 %v1323
        %1344 = vmatprep.subr.mxu0 0.0
        %1345 = vmatpush1.msra.mxu0 %v1324
        %1346 = vmatprep.subr.mxu0 0.0
        %1347 = vmatpush1.msra.mxu0 %v1325
        %1348 = vmatprep.subr.mxu0 0.0
        %1349 = vmatpush1.msra.mxu0 %v1326
        %1350 = vmatprep.subr.mxu0 0.0
        %1351 = vmatpush1.msra.mxu0 %v1327
        %1352 = vmatprep.subr.mxu0 0.0
        %1353 = vmatpush1.msra.mxu0 %v1328
        %1354 = vmatprep.subr.mxu0 0.0
        %1355 = vmatpush1.msra.mxu0 %v1329
        %1356 = vmatprep.subr.mxu0 0.0
        %1357 = vmatpush1.msra.mxu0 %v1330
        %1358 = vmatprep.subr.mxu0 0.0
        %1359 = vmatpush1.msra.mxu0 %v1331
        %1360 = vmatprep.subr.mxu0 0.0
        %1361 = vmatpush1.msra.mxu0 %v1332
        %1362 = vmatprep.subr.mxu0 0.0
        %1363 = vmatpush1.msra.mxu0 %v1333
        %1364 = vmatprep.subr.mxu0 0.0
        %1365 = vmatpush1.msra.mxu0 %v1334
        %1366 = vmatprep.subr.mxu0 0.0
        %1367 = vmatpush1.msra.mxu0 %v1335
        %1368 = vmatprep.subr.mxu0 0.0
        %1369 = vmatpush1.msra.mxu0 0.0
        %1370 = vmatprep.subr.mxu0 0.0
        %1371 = vmatpush1.msra.mxu0 0.0
        %1372 = vmatprep.subr.mxu0 0.0
        %1373 = vmatpush1.msra.mxu0 0.0
        %1374 = vmatprep.subr.mxu0 0.0
        %1375 = vmatpush1.msra.mxu0 0.0
        %1376 = vmatprep.subr.mxu0 0.0
        %1377 = vmatpush1.msra.mxu0 0.0
        %1378 = vmatprep.subr.mxu0 0.0
        %1379 = vmatpush1.msra.mxu0 0.0
        %1380 = vmatprep.subr.mxu0 0.0
        %1381 = vmatpush1.msra.mxu0 0.0
        %1382 = vmatprep.subr.mxu0 0.0
        %1383 = vmatpush1.msra.mxu0 0.0
        %1384 = vmatprep.subr.mxu0 0.0
        %1385 = vmatpush1.msra.mxu0 0.0
        %1386 = vmatprep.subr.mxu0 0.0
        %1387 = vmatpush1.msra.mxu0 0.0
        %1388 = vmatprep.subr.mxu0 0.0
        %1389 = vmatpush1.msra.mxu0 0.0
        %1390 = vmatprep.subr.mxu0 0.0
        %1391 = vmatpush1.msra.mxu0 0.0
        %1392 = vmatprep.subr.mxu0 0.0
        %1393 = vmatpush1.msra.mxu0 0.0
        %1394 = vmatprep.subr.mxu0 0.0
        %1395 = vmatpush1.msra.mxu0 0.0
        %1396 = vmatprep.subr.mxu0 0.0
        %1397 = vmatpush1.msra.mxu0 0.0
        %1398 = vmatprep.subr.mxu0 0.0
        %1399 = vmatpush1.msra.mxu0 0.0
        %1400 = vmatprep.mubr.f32.mxu0 0.0
        %1401 = vmatmul.mubr.f32.gmra.mrb[0].mxu0 %v1290
        %v1402 = vpop.f32.mrb[0].mxu0
        %v1403 = vadd.f32 0.0, %v1402
        %v1404 = vpop.f32.mrb[0].mxu0
        %1405 = vmatprep.mubr.f32.mxu0 0.0
        %1406 = vmatmul.mubr.f32.gmra.mrb[0].mxu0 %v1293
        %v1407 = vpop.f32.mrb[0].mxu0
        %v1408 = vadd.f32 0.0, %v1407
        %v1409 = vpop.f32.mrb[0].mxu0
        %1410 = vmatprep.mubr.f32.mxu0 0.0
        %1411 = vmatmul.mubr.f32.gmra.mrb[0].mxu0 %v1296
        %v1412 = vpop.f32.mrb[0].mxu0
        %v1413 = vadd.f32 0.0, %v1412
        %v1414 = vpop.f32.mrb[0].mxu0
        %1415 = vmatprep.mubr.f32.mxu0 0.0
        %1416 = vmatmul.mubr.f32.gmra.mrb[0].mxu0 %v1299
        %v1417 = vpop.f32.mrb[0].mxu0
        %v1418 = vadd.f32 0.0, %v1417
        %v1419 = vpop.f32.mrb[0].mxu0
        %1420 = vmatprep.mubr.f32.mxu0 0.0
        %1421 = vmatmul.mubr.f32.gmra.mrb[0].mxu0 %v1302
        %v1422 = vpop.f32.mrb[0].mxu0
        %v1423 = vadd.f32 0.0, %v1422
        %v1424 = vpop.f32.mrb[0].mxu0
        %1425 = vmatprep.mubr.f32.mxu0 0.0
        %1426 = vmatmul.mubr.f32.gmra.mrb[0].mxu0 %v1305
        %v1427 = vpop.f32.mrb[0].mxu0
        %v1428 = vadd.f32 0.0, %v1427
        %v1429 = vpop.f32.mrb[0].mxu0
        %1430 = vmatprep.mubr.f32.mxu0 0.0
        %1431 = vmatmul.mubr.f32.gmra.mrb[0].mxu0 %v1308
        %v1432 = vpop.f32.mrb[0].mxu0
        %v1433 = vadd.f32 0.0, %v1432
        %v1434 = vpop.f32.mrb[0].mxu0
        %1435 = vmatprep.mubr.f32.mxu0 0.0
        %1436 = vmatmul.mubr.f32.gmra.mrb[0].mxu0 %v1311
        %v1437 = vpop.f32.mrb[0].mxu0
        %v1438 = vadd.f32 0.0, %v1437
        %v1439 = vpop.f32.mrb[0].mxu0
        %1440 = vdwg.mxu0
        %v1441 = vld [vmem:[#allocation2] sm:$0xff]
        %v1442 = vld [vmem:[#allocation2 + $0x8] sm:$0xff]
        %v1443 = vld [vmem:[#allocation2 + $0x10] sm:$0xff]
        %v1444 = vld [vmem:[#allocation2 + $0x18] sm:$0xff]
        %v1445 = vld [vmem:[#allocation2 + $0x20] sm:$0xff]
        %v1446 = vld [vmem:[#allocation2 + $0x28] sm:$0xff]
        %v1447 = vld [vmem:[#allocation2 + $0x30] sm:$0xff]
        %v1448 = vld [vmem:[#allocation2 + $0x38] sm:$0xff]
        %v1449 = vadd.f32 %v1441, %v1403
        %v1450 = vadd.f32 %v1442, %v1408
        %v1451 = vadd.f32 %v1443, %v1413
        %v1452 = vadd.f32 %v1444, %v1418
        %v1453 = vadd.f32 %v1445, %v1423
        %v1454 = vadd.f32 %v1446, %v1428
        %v1455 = vadd.f32 %v1447, %v1433
        %v1456 = vadd.f32 %v1448, %v1438
        %1457 = vst [vmem:[#allocation2] sm:$0xff] %v1449
        %1458 = vst [vmem:[#allocation2 + $0x8] sm:$0xff] %v1450
        %1459 = vst [vmem:[#allocation2 + $0x10] sm:$0xff] %v1451
        %1460 = vst [vmem:[#allocation2 + $0x18] sm:$0xff] %v1452
        %1461 = vst [vmem:[#allocation2 + $0x20] sm:$0xff] %v1453
        %1462 = vst [vmem:[#allocation2 + $0x28] sm:$0xff] %v1454
        %1463 = vst [vmem:[#allocation2 + $0x30] sm:$0xff] %v1455
        %1464 = vst [vmem:[#allocation2 + $0x38] sm:$0xff] %v1456
        %v1465 = vld [vmem:[#allocation2] sm:$0xff]
        %v1466 = vld [vmem:[#allocation2 + $0x8] sm:$0xff]
        %v1467 = vld [vmem:[#allocation2 + $0x10] sm:$0xff]
        %v1468 = vld [vmem:[#allocation2 + $0x18] sm:$0xff]
        %v1469 = vld [vmem:[#allocation2 + $0x20] sm:$0xff]
        %v1470 = vld [vmem:[#allocation2 + $0x28] sm:$0xff]
        %v1471 = vld [vmem:[#allocation2 + $0x30] sm:$0xff]
        %v1472 = vld [vmem:[#allocation2 + $0x38] sm:$0xff]
        %1473 = vst [vmem:[%s308] sm:$0xff] %v1465
        %1474 = vst [vmem:[%s308 + $0x8] sm:$0xff] %v1466
        %1475 = vst [vmem:[%s308 + $0x10] sm:$0xff] %v1467
        %1476 = vst [vmem:[%s308 + $0x18] sm:$0xff] %v1468
        %1477 = vst [vmem:[%s308 + $0x20] sm:$0xff] %v1469
        %1478 = vst [vmem:[%s308 + $0x28] sm:$0xff] %v1470
        %1479 = vst [vmem:[%s308 + $0x30] sm:$0xff] %v1471
        %1480 = vst [vmem:[%s308 + $0x38] sm:$0xff] %v1472
        %v1481 = vadd.f32 %v1465, %v1466
        %v1482 = vadd.f32 %v1481, %v1467
        %v1483 = vadd.f32 %v1482, %v1468
        %v1484 = vadd.f32 %v1483, %v1469
        %v1485 = vadd.f32 %v1484, %v1470
        %v1486 = vadd.f32 %v1485, %v1471
        %v1487 = vadd.f32 %v1486, %v1472
        %v1488 = vrot.slane %v1487, 4
        %v1489 = vadd.f32 %v1487, %v1488
        %v1490 = vrot.slane %v1489, 2
        %v1491 = vadd.f32 %v1489, %v1490
        %v1492 = vrot.slane %v1491, 1
        %v1493 = vadd.f32 %v1491, %v1492
        %1494 = vst [vmem:[%s314] sm:$0x1] %v1493
        %v1495 = vmul.f32 %v1465, %v1465
        %v1496 = vmul.f32 %v1466, %v1466
        %v1497 = vmul.f32 %v1467, %v1467
        %v1498 = vmul.f32 %v1468, %v1468
        %v1499 = vmul.f32 %v1469, %v1469
        %v1500 = vmul.f32 %v1470, %v1470
        %v1501 = vmul.f32 %v1471, %v1471
        %v1502 = vmul.f32 %v1472, %v1472
        %v1503 = vadd.f32 %v1495, %v1496
        %v1504 = vadd.f32 %v1503, %v1497
        %v1505 = vadd.f32 %v1504, %v1498
        %v1506 = vadd.f32 %v1505, %v1499
        %v1507 = vadd.f32 %v1506, %v1500
        %v1508 = vadd.f32 %v1507, %v1501
        %v1509 = vadd.f32 %v1508, %v1502
        %v1510 = vrot.slane %v1509, 4
        %v1511 = vadd.f32 %v1509, %v1510
        %v1512 = vrot.slane %v1511, 2
        %v1513 = vadd.f32 %v1511, %v1512
        %v1514 = vrot.slane %v1513, 1
        %v1515 = vadd.f32 %v1513, %v1514
        %1516 = vst [vmem:[%s320] sm:$0x1] %v1515
        %v1517 = vld [vmem:[%s344 + $0x18] sm:$0xff]
        %v1518 = vld [vmem:[%s344 + $0x58] sm:$0xff]
        %v1519 = vld [vmem:[%s344 + $0x98] sm:$0xff]
        %v1520 = vld [vmem:[%s344 + $0xd8] sm:$0xff]
        %v1521 = vld [vmem:[%s344 + $0x118] sm:$0xff]
        %v1522 = vld [vmem:[%s344 + $0x158] sm:$0xff]
        %v1523 = vld [vmem:[%s344 + $0x198] sm:$0xff]
        %v1524 = vld [vmem:[%s344 + $0x1d8] sm:$0xff]
        %v1525 = vld [vmem:[%s2] sm:$0xff]
        %v1526 = vld [vmem:[%s2 + $0x8] sm:$0xff]
        %v1527 = vld [vmem:[%s2 + $0x10] sm:$0xff]
        %v1528 = vld [vmem:[%s2 + $0x18] sm:$0xff]
        %v1529 = vld [vmem:[%s2 + $0x20] sm:$0xff]
        %v1530 = vld [vmem:[%s2 + $0x28] sm:$0xff]
        %v1531 = vld [vmem:[%s2 + $0x30] sm:$0xff]
        %v1532 = vld [vmem:[%s2 + $0x38] sm:$0xff]
        %v1533 = vld [vmem:[%s2 + $0x40] sm:$0xff]
        %v1534 = vld [vmem:[%s2 + $0x48] sm:$0xff]
        %v1535 = vld [vmem:[%s2 + $0x50] sm:$0xff]
        %v1536 = vld [vmem:[%s2 + $0x58] sm:$0xff]
        %v1537 = vld [vmem:[%s2 + $0x60] sm:$0xff]
        %v1538 = vld [vmem:[%s2 + $0x68] sm:$0xff]
        %v1539 = vld [vmem:[%s2 + $0x70] sm:$0xff]
        %v1540 = vld [vmem:[%s2 + $0x78] sm:$0xff]
        %1541 = vmatprep.subr.mxu0 0.0
        %1542 = vmatpush1.msra.mxu0 %v1525
        %1543 = vmatprep.subr.mxu0 0.0
        %1544 = vmatpush1.msra.mxu0 %v1526
        %1545 = vmatprep.subr.mxu0 0.0
        %1546 = vmatpush1.msra.mxu0 %v1527
        %1547 = vmatprep.subr.mxu0 0.0
        %1548 = vmatpush1.msra.mxu0 %v1528
        %1549 = vmatprep.subr.mxu0 0.0
        %1550 = vmatpush1.msra.mxu0 %v1529
        %1551 = vmatprep.subr.mxu0 0.0
        %1552 = vmatpush1.msra.mxu0 %v1530
        %1553 = vmatprep.subr.mxu0 0.0
        %1554 = vmatpush1.msra.mxu0 %v1531
        %1555 = vmatprep.subr.mxu0 0.0
        %1556 = vmatpush1.msra.mxu0 %v1532
        %1557 = vmatprep.subr.mxu0 0.0
        %1558 = vmatpush1.msra.mxu0 %v1533
        %1559 = vmatprep.subr.mxu0 0.0
        %1560 = vmatpush1.msra.mxu0 %v1534
        %1561 = vmatprep.subr.mxu0 0.0
        %1562 = vmatpush1.msra.mxu0 %v1535
        %1563 = vmatprep.subr.mxu0 0.0
        %1564 = vmatpush1.msra.mxu0 %v1536
        %1565 = vmatprep.subr.mxu0 0.0
        %1566 = vmatpush1.msra.mxu0 %v1537
        %1567 = vmatprep.subr.mxu0 0.0
        %1568 = vmatpush1.msra.mxu0 %v1538
        %1569 = vmatprep.subr.mxu0 0.0
        %1570 = vmatpush1.msra.mxu0 %v1539
        %1571 = vmatprep.subr.mxu0 0.0
        %1572 = vmatpush1.msra.mxu0 %v1540
        %1573 = vmatprep.subr.mxu0 0.0
        %1574 = vmatpush1.msra.mxu0 0.0
        %1575 = vmatprep.subr.mxu0 0.0
        %1576 = vmatpush1.msra.mxu0 0.0
        %1577 = vmatprep.subr.mxu0 0.0
        %1578 = vmatpush1.msra.mxu0 0.0
        %1579 = vmatprep.subr.mxu0 0.0
        %1580 = vmatpush1.msra.mxu0 0.0
        %1581 = vmatprep.subr.mxu0 0.0
        %1582 = vmatpush1.msra.mxu0 0.0
        %1583 = vmatprep.subr.mxu0 0.0
        %1584 = vmatpush1.msra.mxu0 0.0
        %1585 = vmatprep.subr.mxu0 0.0
        %1586 = vmatpush1.msra.mxu0 0.0
        %1587 = vmatprep.subr.mxu0 0.0
        %1588 = vmatpush1.msra.mxu0 0.0
        %1589 = vmatprep.subr.mxu0 0.0
        %1590 = vmatpush1.msra.mxu0 0.0
        %1591 = vmatprep.subr.mxu0 0.0
        %1592 = vmatpush1.msra.mxu0 0.0
        %1593 = vmatprep.subr.mxu0 0.0
        %1594 = vmatpush1.msra.mxu0 0.0
        %1595 = vmatprep.subr.mxu0 0.0
        %1596 = vmatpush1.msra.mxu0 0.0
        %1597 = vmatprep.subr.mxu0 0.0
        %1598 = vmatpush1.msra.mxu0 0.0
        %1599 = vmatprep.subr.mxu0 0.0
        %1600 = vmatpush1.msra.mxu0 0.0
        %1601 = vmatprep.subr.mxu0 0.0
        %1602 = vmatpush1.msra.mxu0 0.0
        %1603 = vmatprep.subr.mxu0 0.0
        %1604 = vmatpush1.msra.mxu0 0.0
        %1605 = vmatprep.mubr.f32.mxu0 0.0
        %1606 = vmatmul.mubr.f32.gmra.mrb[0].mxu0 %v1517
        %v1607 = vpop.f32.mrb[0].mxu0
        %v1608 = vadd.f32 0.0, %v1607
        %v1609 = vpop.f32.mrb[0].mxu0
        %1610 = vmatprep.mubr.f32.mxu0 0.0
        %1611 = vmatmul.mubr.f32.gmra.mrb[0].mxu0 %v1518
        %v1612 = vpop.f32.mrb[0].mxu0
        %v1613 = vadd.f32 0.0, %v1612
        %v1614 = vpop.f32.mrb[0].mxu0
        %1615 = vmatprep.mubr.f32.mxu0 0.0
        %1616 = vmatmul.mubr.f32.gmra.mrb[0].mxu0 %v1519
        %v1617 = vpop.f32.mrb[0].mxu0
        %v1618 = vadd.f32 0.0, %v1617
        %v1619 = vpop.f32.mrb[0].mxu0
        %1620 = vmatprep.mubr.f32.mxu0 0.0
        %1621 = vmatmul.mubr.f32.gmra.mrb[0].mxu0 %v1520
        %v1622 = vpop.f32.mrb[0].mxu0
        %v1623 = vadd.f32 0.0, %v1622
        %v1624 = vpop.f32.mrb[0].mxu0
        %1625 = vmatprep.mubr.f32.mxu0 0.0
        %1626 = vmatmul.mubr.f32.gmra.mrb[0].mxu0 %v1521
        %v1627 = vpop.f32.mrb[0].mxu0
        %v1628 = vadd.f32 0.0, %v1627
        %v1629 = vpop.f32.mrb[0].mxu0
        %1630 = vmatprep.mubr.f32.mxu0 0.0
        %1631 = vmatmul.mubr.f32.gmra.mrb[0].mxu0 %v1522
        %v1632 = vpop.f32.mrb[0].mxu0
        %v1633 = vadd.f32 0.0, %v1632
        %v1634 = vpop.f32.mrb[0].mxu0
        %1635 = vmatprep.mubr.f32.mxu0 0.0
        %1636 = vmatmul.mubr.f32.gmra.mrb[0].mxu0 %v1523
        %v1637 = vpop.f32.mrb[0].mxu0
        %v1638 = vadd.f32 0.0, %v1637
        %v1639 = vpop.f32.mrb[0].mxu0
        %1640 = vmatprep.mubr.f32.mxu0 0.0
        %1641 = vmatmul.mubr.f32.gmra.mrb[0].mxu0 %v1524
        %v1642 = vpop.f32.mrb[0].mxu0
        %v1643 = vadd.f32 0.0, %v1642
        %v1644 = vpop.f32.mrb[0].mxu0
        %1645 = vdwg.mxu0
        %1646 = vst [vmem:[%s327] sm:$0xff] %v1608
        %1647 = vst [vmem:[%s327 + $0x8] sm:$0xff] %v1613
        %1648 = vst [vmem:[%s327 + $0x10] sm:$0xff] %v1618
        %1649 = vst [vmem:[%s327 + $0x18] sm:$0xff] %v1623
        %1650 = vst [vmem:[%s327 + $0x20] sm:$0xff] %v1628
        %1651 = vst [vmem:[%s327 + $0x28] sm:$0xff] %v1633
        %1652 = vst [vmem:[%s327 + $0x30] sm:$0xff] %v1638
        %1653 = vst [vmem:[%s327 + $0x38] sm:$0xff] %v1643
        %v1654 = vadd.f32 %v1608, %v1613
        %v1655 = vadd.f32 %v1654, %v1618
        %v1656 = vadd.f32 %v1655, %v1623
        %v1657 = vadd.f32 %v1656, %v1628
        %v1658 = vadd.f32 %v1657, %v1633
        %v1659 = vadd.f32 %v1658, %v1638
        %v1660 = vadd.f32 %v1659, %v1643
        %v1661 = vrot.slane %v1660, 4
        %v1662 = vadd.f32 %v1660, %v1661
        %v1663 = vrot.slane %v1662, 2
        %v1664 = vadd.f32 %v1662, %v1663
        %v1665 = vrot.slane %v1664, 1
        %v1666 = vadd.f32 %v1664, %v1665
        %1667 = vst [vmem:[%s333] sm:$0x1] %v1666
        %v1668 = vmul.f32 %v1608, %v1608
        %v1669 = vmul.f32 %v1613, %v1613
        %v1670 = vmul.f32 %v1618, %v1618
        %v1671 = vmul.f32 %v1623, %v1623
        %v1672 = vmul.f32 %v1628, %v1628
        %v1673 = vmul.f32 %v1633, %v1633
        %v1674 = vmul.f32 %v1638, %v1638
        %v1675 = vmul.f32 %v1643, %v1643
        %v1676 = vadd.f32 %v1668, %v1669
        %v1677 = vadd.f32 %v1676, %v1670
        %v1678 = vadd.f32 %v1677, %v1671
        %v1679 = vadd.f32 %v1678, %v1672
        %v1680 = vadd.f32 %v1679, %v1673
        %v1681 = vadd.f32 %v1680, %v1674
        %v1682 = vadd.f32 %v1681, %v1675
        %v1683 = vrot.slane %v1682, 4
        %v1684 = vadd.f32 %v1682, %v1683
        %v1685 = vrot.slane %v1684, 2
        %v1686 = vadd.f32 %v1684, %v1685
        %v1687 = vrot.slane %v1686, 1
        %v1688 = vadd.f32 %v1686, %v1687
        %1689 = vst [vmem:[%s339] sm:$0x1] %v1688
        %s1690 = sand.u32 %s108, 1
        %s1691 = scalar_lea.sflag [#allocation4], %s1690
        %s1692 = sand.u32 %s108, 1
        %s1693 = smul.addr %s1692, 64
        %s1694 = scalar_lea.vmem [#allocation3], %s1693
        %s1695 = sand.u32 %s32, 1
        %s1696 = scalar_lea.sflag [#allocation6], %s1695
        %s1697 = sand.u32 %s134, 1
        %s1698 = scalar_lea.vmem [#allocation5], %s1697
        %s1699 = sand.u32 %s32, 1
        %s1700 = scalar_lea.sflag [#allocation6], %s1699
        %s1701 = sand.u32 %s160, 1
        %s1702 = scalar_lea.vmem [#allocation7], %s1701
        %s1703 = sand.u32 %s32, 1
        %s1704 = scalar_lea.sflag [#allocation9], %s1703
        %s1705 = sand.u32 %s186, 1
        %s1706 = smul.addr %s1705, 64
        %s1707 = scalar_lea.vmem [#allocation8], %s1706
        %s1708 = sand.u32 %s32, 1
        %s1709 = scalar_lea.sflag [#allocation9], %s1708
        %s1710 = sand.u32 %s212, 1
        %s1711 = scalar_lea.vmem [#allocation10], %s1710
        %s1712 = sand.u32 %s238, 1
        %s1713 = scalar_lea.sflag [#allocation12], %s1712
        %s1714 = sand.u32 %s238, 1
        %s1715 = scalar_lea.vmem [#allocation11], %s1714
        // Predicated region
        $region33: #{tpu_custom_call.1} parent=31 // pred_check
          %p1716 = pneg %p118
        $region34: #{tpu_custom_call.1} parent=31 // pred_check_branch
          %1718 = sbr.rel (%p1716) target = $region36
        $region35: #{tpu_custom_call.1} parent=31 // pred_region
          %s1720 = ssub.s32 1024, 1024
          %1721 = vsyncadd %s1691, %s1720
          %s1722 = smul.addr %s32, 8
          %s1723 = smul.addr %s1722, 128
          %s1724 = scalar_lea.hbm %s3, %s1723
          %s1725 = sshll.u32 %s1694, 4
          %s1726 = int_to_ptr.vmem [resolvable:$true] %s1725
          %1731 = dma.vmem_to_hbm [thread:$0]  %s1726, 1024, %s1724, %s1691, 128, 128, 8
        $region36: #{tpu_custom_call.1} parent=31 // pred_fallthru
          _
        // Predicated region
        $region37: #{tpu_custom_call.1} parent=31 // pred_check
          %p1732 = pneg %p144
        $region38: #{tpu_custom_call.1} parent=31 // pred_check_branch
          %1734 = sbr.rel (%p1732) target = $region40
        $region39: #{tpu_custom_call.1} parent=31 // pred_region
          %s1736 = ssub.s32 16, 16
          %1737 = vsyncadd %s1696, %s1736
          %s1738 = smul.addr %s32, 16
          %s1739 = scalar_lea.hbm %s4, %s1738
          %s1741 = sshll.u32 %s1698, 4
          %s1742 = int_to_ptr.vmem [resolvable:$true] %s1741
          %1744 = dma.vmem_to_hbm [thread:$0]  %s1742, 16, %s1739, %s1696
        $region40: #{tpu_custom_call.1} parent=31 // pred_fallthru
          _
        // Predicated region
        $region41: #{tpu_custom_call.1} parent=31 // pred_check
          %p1745 = pneg %p170
        $region42: #{tpu_custom_call.1} parent=31 // pred_check_branch
          %1747 = sbr.rel (%p1745) target = $region44
        $region43: #{tpu_custom_call.1} parent=31 // pred_region
          %s1749 = ssub.s32 16, 16
          %1750 = vsyncadd %s1700, %s1749
          %s1751 = smul.addr %s32, 16
          %s1752 = scalar_lea.hbm %s5, %s1751
          %s1754 = sshll.u32 %s1702, 4
          %s1755 = int_to_ptr.vmem [resolvable:$true] %s1754
          %1757 = dma.vmem_to_hbm [thread:$0]  %s1755, 16, %s1752, %s1700
        $region44: #{tpu_custom_call.1} parent=31 // pred_fallthru
          _
        // Predicated region
        $region45: #{tpu_custom_call.1} parent=31 // pred_check
          %p1758 = pneg %p196
        $region46: #{tpu_custom_call.1} parent=31 // pred_check_branch
          %1760 = sbr.rel (%p1758) target = $region48
        $region47: #{tpu_custom_call.1} parent=31 // pred_region
          %s1762 = ssub.s32 1024, 1024
          %1763 = vsyncadd %s1704, %s1762
          %s1764 = smul.addr %s32, 8
          %s1765 = smul.addr %s1764, 128
          %s1766 = scalar_lea.hbm %s6, %s1765
          %s1767 = sshll.u32 %s1707, 4
          %s1768 = int_to_ptr.vmem [resolvable:$true] %s1767
          %1773 = dma.vmem_to_hbm [thread:$0]  %s1768, 1024, %s1766, %s1704, 128, 128, 8
        $region48: #{tpu_custom_call.1} parent=31 // pred_fallthru
          _
        // Predicated region
        $region49: #{tpu_custom_call.1} parent=31 // pred_check
          %p1774 = pneg %p222
        $region50: #{tpu_custom_call.1} parent=31 // pred_check_branch
          %1776 = sbr.rel (%p1774) target = $region52
        $region51: #{tpu_custom_call.1} parent=31 // pred_region
          %s1778 = ssub.s32 16, 16
          %1779 = vsyncadd %s1709, %s1778
          %s1780 = smul.addr %s32, 16
          %s1781 = scalar_lea.hbm %s7, %s1780
          %s1783 = sshll.u32 %s1711, 4
          %s1784 = int_to_ptr.vmem [resolvable:$true] %s1783
          %1786 = dma.vmem_to_hbm [thread:$0]  %s1784, 16, %s1781, %s1709
        $region52: #{tpu_custom_call.1} parent=31 // pred_fallthru
          _
        // Predicated region
        $region53: #{tpu_custom_call.1} parent=31 // pred_check
          %p1787 = pneg %p248
        $region54: #{tpu_custom_call.1} parent=31 // pred_check_branch
          %1789 = sbr.rel (%p1787) target = $region56
        $region55: #{tpu_custom_call.1} parent=31 // pred_region
          %s1791 = ssub.s32 16, 16
          %1792 = vsyncadd %s1713, %s1791
          %s1793 = smul.addr %s32, 16
          %s1794 = scalar_lea.hbm %s8, %s1793
          %s1796 = sshll.u32 %s1715, 4
          %s1797 = int_to_ptr.vmem [resolvable:$true] %s1796
          %1799 = dma.vmem_to_hbm [thread:$0]  %s1797, 16, %s1794, %s1713
        $region56: #{tpu_custom_call.1} parent=31 // pred_fallthru
          _
      $region32: #{tpu_custom_call.1} parent=5 // pred_fallthru
        _
      %p1800 = scmp.le.s32.totalorder 2, %s27
      // Predicated region
      $region57: #{tpu_custom_call.1} parent=5 // pred_check
        %p1801 = pneg %p1800
      $region58: #{tpu_custom_call.1} parent=5 // pred_check_branch
        %1803 = sbr.rel (%p1801) target = $region60
      $region59: #{tpu_custom_call.1} parent=5 // pred_region
        %s1804 = ssub.s32 %s27, 2
        // Predicated region
        $region61: #{tpu_custom_call.1} parent=59 // pred_check
          %p1805 = pneg %p124
        $region62: #{tpu_custom_call.1} parent=59 // pred_check_branch
          %1807 = sbr.rel (%p1805) target = $region64
        $region63: #{tpu_custom_call.1} parent=59 // pred_region
          %s1808 = sand.u32 %s109, 1
          %s1809 = scalar_lea.sflag [#allocation4], %s1808
          %s1810 = sand.u32 %s109, 1
          %s1811 = smul.addr %s1810, 64
          %s1812 = scalar_lea.vmem [#allocation3], %s1811
          %1813 = dma.done %s1809, 1024
        $region64: #{tpu_custom_call.1} parent=59 // pred_fallthru
          _
        // Predicated region
        $region65: #{tpu_custom_call.1} parent=59 // pred_check
          %p1814 = pneg %p150
        $region66: #{tpu_custom_call.1} parent=59 // pred_check_branch
          %1816 = sbr.rel (%p1814) target = $region68
        $region67: #{tpu_custom_call.1} parent=59 // pred_region
          %s1817 = sand.u32 %s33, 1
          %s1818 = scalar_lea.sflag [#allocation6], %s1817
          %s1819 = sand.u32 %s135, 1
          %s1820 = scalar_lea.vmem [#allocation5], %s1819
          %1821 = dma.done %s1818, 16
        $region68: #{tpu_custom_call.1} parent=59 // pred_fallthru
          _
        // Predicated region
        $region69: #{tpu_custom_call.1} parent=59 // pred_check
          %p1822 = pneg %p176
        $region70: #{tpu_custom_call.1} parent=59 // pred_check_branch
          %1824 = sbr.rel (%p1822) target = $region72
        $region71: #{tpu_custom_call.1} parent=59 // pred_region
          %s1825 = sand.u32 %s33, 1
          %s1826 = scalar_lea.sflag [#allocation6], %s1825
          %s1827 = sand.u32 %s161, 1
          %s1828 = scalar_lea.vmem [#allocation7], %s1827
          %1829 = dma.done %s1826, 16
        $region72: #{tpu_custom_call.1} parent=59 // pred_fallthru
          _
        // Predicated region
        $region73: #{tpu_custom_call.1} parent=59 // pred_check
          %p1830 = pneg %p202
        $region74: #{tpu_custom_call.1} parent=59 // pred_check_branch
          %1832 = sbr.rel (%p1830) target = $region76
        $region75: #{tpu_custom_call.1} parent=59 // pred_region
          %s1833 = sand.u32 %s33, 1
          %s1834 = scalar_lea.sflag [#allocation9], %s1833
          %s1835 = sand.u32 %s187, 1
          %s1836 = smul.addr %s1835, 64
          %s1837 = scalar_lea.vmem [#allocation8], %s1836
          %1838 = dma.done %s1834, 1024
        $region76: #{tpu_custom_call.1} parent=59 // pred_fallthru
          _
        // Predicated region
        $region77: #{tpu_custom_call.1} parent=59 // pred_check
          %p1839 = pneg %p228
        $region78: #{tpu_custom_call.1} parent=59 // pred_check_branch
          %1841 = sbr.rel (%p1839) target = $region80
        $region79: #{tpu_custom_call.1} parent=59 // pred_region
          %s1842 = sand.u32 %s33, 1
          %s1843 = scalar_lea.sflag [#allocation9], %s1842
          %s1844 = sand.u32 %s213, 1
          %s1845 = scalar_lea.vmem [#allocation10], %s1844
          %1846 = dma.done %s1843, 16
        $region80: #{tpu_custom_call.1} parent=59 // pred_fallthru
          _
        // Predicated region
        $region81: #{tpu_custom_call.1} parent=59 // pred_check
          %p1847 = pneg %p254
        $region82: #{tpu_custom_call.1} parent=59 // pred_check_branch
          %1849 = sbr.rel (%p1847) target = $region84
        $region83: #{tpu_custom_call.1} parent=59 // pred_region
          %s1850 = sand.u32 %s239, 1
          %s1851 = scalar_lea.sflag [#allocation12], %s1850
          %s1852 = sand.u32 %s239, 1
          %s1853 = scalar_lea.vmem [#allocation11], %s1852
          %1854 = dma.done %s1851, 16
        $region84: #{tpu_custom_call.1} parent=59 // pred_fallthru
          _
      $region60: #{tpu_custom_call.1} parent=5 // pred_fallthru
        _
    $region6: #{tpu_custom_call.1} parent=1 // loop_footer
      %s31 = sadd.s32 1, %s27
    $region7: #{tpu_custom_call.1} parent=1 // loop_footer_branch
      %26 = sbr.rel target = $region3
    $region8: #{tpu_custom_call.1} parent=1 // loop_exit
      _
    %1855 = vsyncpa [#allocation4], 1
    %s1856 = scalar_lea.sflag [#allocation4], 1
    %1857 = vsyncpa %s1856, 1
    %1858 = vsyncpa [#allocation6], 1
    %s1859 = scalar_lea.sflag [#allocation6], 1
    %1860 = vsyncpa %s1859, 1
    %1861 = vsyncpa [#allocation9], 1
    %s1862 = scalar_lea.sflag [#allocation9], 1
    %1863 = vsyncpa %s1862, 1
    %1864 = vsyncpa [#allocation12], 1
    %s1865 = scalar_lea.sflag [#allocation12], 1
    %1866 = vsyncpa %s1865, 1

</llo_original>
